<compile_context>
chip_gen: v6e
topology: v6e:2x2x1
jax: 0.10.0
libtpu: 0.0.40
codegen_flags: <defaults>
</compile_context>

<pallas_src>
import jax
import jax.numpy as jnp
from jax.experimental import pallas as pl
from jax.experimental.pallas import tpu as pltpu

# Small stand-in configuration (original: C=768, heads=12, head_dim=64, 32 query
# tokens, N ~ 196 ViT tokens).  Do NOT tune tiling from these shapes.
B = 2            # batch
N = 16           # vision tokens
C = 128          # hidden size
NUM_HEADS = 2
HEAD_DIM = C // NUM_HEADS          # 64 — same head_dim as 768 // 12 in the original
SCALE = HEAD_DIM ** (-0.5)         # matches self.scale = (768 // num_heads) ** -0.5
Q = 8            # query tokens (stand-in for 32)
LN_EPS = 1e-5

# Row layout of the packed (8, C) per-channel-vector operand.
_CT_LN_W, _CT_LN_B, _PET_LN_W, _PET_LN_B, _PROJ_LN_W, _PROJ_LN_B, _B_V, _B_PROJ = range(8)


def _layernorm_f32(x, w, b, eps=LN_EPS):
    # fp16-safe LayerNorm: statistics always in f32 (matches the torch subclass).
    mean = jnp.mean(x, axis=-1, keepdims=True)
    var = jnp.mean(jnp.square(x - mean), axis=-1, keepdims=True)
    return (x - mean) * jax.lax.rsqrt(var + eps) * w + b


# ---------------------------------------------------------------------------
# One fused kernel: LN(ct), LN(pet), qk/v multi-head cross-attention, proj,
# proj_layer LayerNorm and F.normalize(dim=1).  No HBM round-trips in between.
# ---------------------------------------------------------------------------
def fused_forward_kernel(ct_ref, pet_ref, vecs_ref, wqk_ref, bqk_ref, wv_ref, wp_ref,
                         emb_ref):
    bb, n, c = ct_ref.shape
    hd = c // NUM_HEADS
    vecs = vecs_ref[...]                                   # (8, C) f32, one tile

    # ---- ct_ln_vision / pet_ln_vision (f32 statistics) ----
    ct = _layernorm_f32(ct_ref[...].astype(jnp.float32), vecs[_CT_LN_W], vecs[_CT_LN_B])
    pet = _layernorm_f32(pet_ref[...].astype(jnp.float32), vecs[_PET_LN_W], vecs[_PET_LN_B])

    # ---- qk / v projections: bf16 operands on the MXU, f32 accumulation ----
    ct2 = ct.reshape(bb * n, c).astype(jnp.bfloat16)
    pet2 = pet.reshape(bb * n, c).astype(jnp.bfloat16)
    qk = jnp.dot(ct2, wqk_ref[...], preferred_element_type=jnp.float32) + bqk_ref[...]
    v = jnp.dot(pet2, wv_ref[...], preferred_element_type=jnp.float32) + vecs[_B_V]
    qk = qk.reshape(bb, n, 2 * c)
    # Attention scale is already folded into the q columns of w_qk / b_qk.
    q = qk[..., :c].astype(jnp.bfloat16)
    k = qk[..., c:].astype(jnp.bfloat16)
    v = v.reshape(bb, n, c).astype(jnp.bfloat16)

    # ---- multi-head attention + proj, accumulated lane-dense (no scratch slab,
    #      no masked 64-lane stores): out += softmax(q_h k_h^T) v_h @ Wp[h rows]
    out = jnp.zeros((bb * n, c), jnp.float32)
    for h in range(NUM_HEADS):                             # static loop
        lo = h * hd
        hi = lo + hd
        qh = q[..., lo:hi]                                 # (bb, n, hd) bf16
        kh = k[..., lo:hi]
        vh = v[..., lo:hi]
        s = jnp.einsum('bnd,bmd->bnm', qh, kh, preferred_element_type=jnp.float32)
        s = s - jnp.max(s, axis=-1, keepdims=True)
        p = jnp.exp(s)
        p = p * pl.reciprocal(jnp.sum(p, axis=-1, keepdims=True), approx=True)
        # attn_drop has p = 0.0 -> identity.
        oh = jnp.einsum('bnm,bmd->bnd', p.astype(jnp.bfloat16), vh,
                        preferred_element_type=jnp.float32)          # (bb, n, hd)
        out = out + jnp.dot(oh.reshape(bb * n, hd).astype(jnp.bfloat16),
                            wp_ref[lo:hi, :], preferred_element_type=jnp.float32)

    # ---- proj bias + proj_layer LayerNorm + F.normalize (dim=1 -> token axis) ----
    out = out + vecs[_B_PROJ]
    out = out.reshape(bb, n, c)
    out = _layernorm_f32(out, vecs[_PROJ_LN_W], vecs[_PROJ_LN_B])
    norm = jnp.sqrt(jnp.sum(out * out, axis=1, keepdims=True))        # (bb, 1, c)
    out = out / jnp.maximum(norm, 1e-12)
    emb_ref[...] = out.astype(emb_ref.dtype)


# ---------------------------------------------------------------------------
# Batch blocking policy (per chip generation)
# ---------------------------------------------------------------------------
def _largest_divisor_leq(n, cap):
    for d in range(min(n, cap), 0, -1):
        if n % d == 0:
            return d
    return 1


def _pick_batch_block(batch):
    """v7x (2 TCs, 256-row MXU): a few samples per step so M = bb*N fills the MXU
    while the 'parallel' batch axis still shards across both cores.
    v5e / v6e: modest block (<= 8) so there are several grid steps and BlockSpec
    pipelining overlaps the ct/pet HBM->VMEM DMA of step i+1 with compute of
    step i, keeping the per-step f32 working set well under the scoped-VMEM
    default instead of one unpipelined full-batch block."""
    try:
        kind = jax.devices()[0].device_kind.lower()
    except Exception:
        kind = ""
    cap = 4 if "7" in kind else 8
    return _largest_divisor_leq(batch, cap)


# ---------------------------------------------------------------------------
# Risk head (fc_1 -> sigmoid -> fc_2), hoisted out of the kernel: with the
# Qformer stubbed it depends only on the broadcast query tokens, so it is
# batch-invariant and its (C,1)/(1,1) operands would only waste VMEM/DMA
# descriptors and per-step epilogue inside the kernel.
# ---------------------------------------------------------------------------
def _risk_head(params, batch):
    # TODO(synk): in the original model `lhs` is the Qformer BERT
    # last_hidden_state (pretrained BertLMHeadModel stack, no Pallas
    # equivalent); here lhs == broadcast query_tokens, so risk carries no
    # per-sample signal.
    qtok = params['query_tokens'].reshape(-1, params['query_tokens'].shape[-1])  # (Q, C)
    t = qtok @ params['fc1_wT'] + params['fc1_b']            # (Q, 1)
    s = jax.nn.sigmoid(t)                                    # self.at1
    r = s.reshape(1, -1) @ params['fc2_wT'] + params['fc2_b']  # (1, 1)
    return jnp.broadcast_to(r, (batch, 1))


# ---------------------------------------------------------------------------
# Wrapper: one pallas_call for the fused vision/attention path + plain-JAX head.
# ---------------------------------------------------------------------------
def risk_model_forward(ct_feats, pet_feats, params, *, batch_block=None):
    Bx, Nx, Cx = ct_feats.shape
    bb = batch_block if batch_block is not None else _pick_batch_block(Bx)
    assert Bx % bb == 0
    grid = (Bx // bb,)

    # Pack the eight (1, C) per-channel vectors into one (8, C) operand: exactly
    # one f32 tile, one DMA, one VMEM buffer instead of eight sublane-padded blocks.
    vecs = jnp.concatenate(
        [params['ct_ln_w'], params['ct_ln_b'],
         params['pet_ln_w'], params['pet_ln_b'],
         params['ln_proj_w'], params['ln_proj_b'],
         params['b_v'], params['b_proj']], axis=0)           # (8, C) f32

    feat_spec = pl.BlockSpec((bb, Nx, Cx), lambda i: (i, 0, 0))

    def const(shape):
        # Grid-invariant operand: stays resident in VMEM, single-buffered
        # (no 2x VMEM for weights, no per-step re-DMA bookkeeping).
        return pl.BlockSpec(shape, lambda i: (0, 0), pipeline_mode=pl.Buffered(1))

    emb = pl.pallas_call(
        fused_forward_kernel,
        out_shape=jax.ShapeDtypeStruct((Bx, Nx, Cx), ct_feats.dtype),   # img_embeds
        grid=grid,
        in_specs=[
            feat_spec, feat_spec,                      # ct, pet features (pipelined)
            const((8, Cx)),                            # packed LN w/b + b_v + b_proj
            const((Cx, 2 * Cx)), const((1, 2 * Cx)),   # qk (scale folded, bf16 W)
            const((Cx, Cx)),                           # v (bf16 W)
            const((Cx, Cx)),                           # proj (bf16 W)
        ],
        out_specs=pl.BlockSpec((bb, Nx, Cx), lambda i: (i, 0, 0)),
        compiler_params=pltpu.CompilerParams(
            dimension_semantics=("parallel",)),
    )(ct_feats, pet_feats, vecs,
      params['w_qk'], params['b_qk'], params['w_v'], params['w_proj'])

    risk = _risk_head(params, Bx).astype(ct_feats.dtype)
    return risk, emb


# ---------------------------------------------------------------------------
# Parameters (deterministic; matches the shapes declared in __init__, scaled down)
# ---------------------------------------------------------------------------
def init_params(key):
    ks = jax.random.split(key, 9)
    std = 0.02
    p = {}
    # LayerNorm init: weight=1, bias=0 (PyTorch default)
    p['ct_ln_w'] = jnp.ones((1, C), jnp.float32)
    p['ct_ln_b'] = jnp.zeros((1, C), jnp.float32)
    p['pet_ln_w'] = jnp.ones((1, C), jnp.float32)
    p['pet_ln_b'] = jnp.zeros((1, C), jnp.float32)
    p['ln_proj_w'] = jnp.ones((1, C), jnp.float32)
    p['ln_proj_b'] = jnp.zeros((1, C), jnp.float32)

    # Linears stored transposed (in, out) so the kernel can do x @ W directly.
    w_qk = jax.random.normal(ks[0], (C, 2 * C), jnp.float32) * std
    b_qk = jax.random.normal(ks[1], (1, 2 * C), jnp.float32) * std
    # Fold the attention scale into the q half of the qk projection (exact rewrite
    # of `(q @ k^T) * scale`) so the kernel never multiplies the NxN score matrix.
    w_qk = w_qk.at[:, :C].multiply(SCALE)
    b_qk = b_qk.at[:, :C].multiply(SCALE)
    # MXU operand weights in bf16 (kernel accumulates in f32); biases stay f32.
    p['w_qk'] = w_qk.astype(jnp.bfloat16)
    p['b_qk'] = b_qk
    p['w_v'] = (jax.random.normal(ks[2], (C, C), jnp.float32) * std).astype(jnp.bfloat16)
    p['b_v'] = jax.random.normal(ks[3], (1, C), jnp.float32) * std
    p['w_proj'] = (jax.random.normal(ks[4], (C, C), jnp.float32) * std).astype(jnp.bfloat16)
    p['b_proj'] = jax.random.normal(ks[5], (1, C), jnp.float32) * std

    # query tokens ~ N(0, initializer_range)
    p['query_tokens'] = jax.random.normal(ks[6], (1, Q, C), jnp.float32) * std

    # fc_1: Linear(C, 1), fc_2: Linear(Q, 1) -- stored transposed for x @ W.
    fc1_w = jax.random.normal(ks[7], (1, C), jnp.float32) * std
    p['fc1_wT'] = fc1_w.T                       # (C, 1)
    p['fc1_b'] = jnp.zeros((1, 1), jnp.float32)
    fc2_w = jax.random.normal(ks[8], (1, Q), jnp.float32) * std
    p['fc2_wT'] = fc2_w.T                       # (Q, 1)
    p['fc2_b'] = jnp.zeros((1, 1), jnp.float32)
    return p


if __name__ == "__main__":
    key = jax.random.PRNGKey(0)
    k_ct, k_pet, k_p = jax.random.split(key, 3)
    # Stand-ins for forward_features() of the frozen pretrained ViT encoders.
    ct_feats = jax.random.normal(k_ct, (B, N, C), jnp.float32)
    pet_feats = jax.random.normal(k_pet, (B, N, C), jnp.float32)
    params = init_params(k_p)

    fwd = jax.jit(risk_model_forward)
    risk, img_embeds = fwd(ct_feats, pet_feats, params)
    jax.block_until_ready((risk, img_embeds))

    assert risk.shape == (B, 1)
    assert img_embeds.shape == (B, N, C)
    print("KERNEL_OK")
</pallas_src>

<mosaic_0001>
module attributes {stable_mosaic.version = 11 : i64} {
  func.func @fused_forward_kernel(%arg0: i32, %arg1: memref<2x16x128xf32, #tpu.memory_space<vmem>>, %arg2: memref<2x16x128xf32, #tpu.memory_space<vmem>>, %arg3: memref<8x128xf32, #tpu.memory_space<vmem>>, %arg4: memref<128x256xbf16, #tpu.memory_space<vmem>>, %arg5: memref<1x256xf32, #tpu.memory_space<vmem>>, %arg6: memref<128x128xbf16, #tpu.memory_space<vmem>>, %arg7: memref<128x128xbf16, #tpu.memory_space<vmem>>, %arg8: memref<2x16x128xf32, #tpu.memory_space<vmem>>) attributes {dimension_semantics = [#tpu.dimension_semantics<parallel>], iteration_bounds = array<i64: 1>, scalar_prefetch = 0 : i64, scratch_operands = 0 : i64, tpu.core_type = #tpu.core_type<tc>, window_params = [{transform_indices = @transform_0, window_bounds = array<i64: 2, 16, 128>}, {transform_indices = @transform_1, window_bounds = array<i64: 2, 16, 128>}, {pipeline_mode = #tpu.pipeline_mode<synchronous>, transform_indices = @transform_2, window_bounds = array<i64: 8, 128>}, {pipeline_mode = #tpu.pipeline_mode<synchronous>, transform_indices = @transform_3, window_bounds = array<i64: 128, 256>}, {pipeline_mode = #tpu.pipeline_mode<synchronous>, transform_indices = @transform_4, window_bounds = array<i64: 1, 256>}, {pipeline_mode = #tpu.pipeline_mode<synchronous>, transform_indices = @transform_5, window_bounds = array<i64: 128, 128>}, {pipeline_mode = #tpu.pipeline_mode<synchronous>, transform_indices = @transform_6, window_bounds = array<i64: 128, 128>}, {transform_indices = @transform_7, window_bounds = array<i64: 2, 16, 128>}]} {
    %c0 = arith.constant 0 : index
    %c0_0 = arith.constant 0 : index
    %0 = vector.load %arg3[%c0, %c0_0] : memref<8x128xf32, #tpu.memory_space<vmem>>, vector<8x128xf32>
    %c0_1 = arith.constant 0 : index
    %c0_2 = arith.constant 0 : index
    %c0_3 = arith.constant 0 : index
    %1 = vector.load %arg1[%c0_1, %c0_2, %c0_3] : memref<2x16x128xf32, #tpu.memory_space<vmem>>, vector<2x16x128xf32>
    %2 = vector.extract_strided_slice %0 {offsets = [0, 0], sizes = [1, 128], strides = [1, 1]} : vector<8x128xf32> to vector<1x128xf32>
    %3 = vector.shape_cast %2 : vector<1x128xf32> to vector<128xf32>
    %4 = vector.extract_strided_slice %0 {offsets = [1, 0], sizes = [1, 128], strides = [1, 1]} : vector<8x128xf32> to vector<1x128xf32>
    %5 = vector.shape_cast %4 : vector<1x128xf32> to vector<128xf32>
    %cst = arith.constant dense<0.000000e+00> : vector<2x16xf32>
    %6 = vector.multi_reduction <add>, %1, %cst [2] : vector<2x16x128xf32> to vector<2x16xf32>
    %7 = vector.shape_cast %6 : vector<2x16xf32> to vector<2x16x1xf32>
    %cst_4 = arith.constant 1.280000e+02 : f32
    %8 = vector.broadcast %cst_4 : f32 to vector<2x16x1xf32>
    %9 = arith.divf %7, %8 : vector<2x16x1xf32>
    %10 = vector.broadcast %9 : vector<2x16x1xf32> to vector<2x16x128xf32>
    %11 = arith.subf %1, %10 : vector<2x16x128xf32>
    %12 = arith.mulf %11, %11 : vector<2x16x128xf32>
    %cst_5 = arith.constant dense<0.000000e+00> : vector<2x16xf32>
    %13 = vector.multi_reduction <add>, %12, %cst_5 [2] : vector<2x16x128xf32> to vector<2x16xf32>
    %14 = vector.shape_cast %13 : vector<2x16xf32> to vector<2x16x1xf32>
    %cst_6 = arith.constant 1.280000e+02 : f32
    %15 = vector.broadcast %cst_6 : f32 to vector<2x16x1xf32>
    %16 = arith.divf %14, %15 : vector<2x16x1xf32>
    %17 = vector.broadcast %9 : vector<2x16x1xf32> to vector<2x16x128xf32>
    %18 = arith.subf %1, %17 : vector<2x16x128xf32>
    %cst_7 = arith.constant 9.99999974E-6 : f32
    %19 = vector.broadcast %cst_7 : f32 to vector<2x16x1xf32>
    %20 = arith.addf %16, %19 : vector<2x16x1xf32>
    %21 = math.rsqrt %20 : vector<2x16x1xf32>
    %22 = vector.broadcast %21 : vector<2x16x1xf32> to vector<2x16x128xf32>
    %23 = arith.mulf %18, %22 : vector<2x16x128xf32>
    %24 = vector.shape_cast %3 : vector<128xf32> to vector<1x1x128xf32>
    %25 = vector.broadcast %24 : vector<1x1x128xf32> to vector<2x16x128xf32>
    %26 = arith.mulf %23, %25 : vector<2x16x128xf32>
    %27 = vector.shape_cast %5 : vector<128xf32> to vector<1x1x128xf32>
    %28 = vector.broadcast %27 : vector<1x1x128xf32> to vector<2x16x128xf32>
    %29 = arith.addf %26, %28 : vector<2x16x128xf32>
    %c0_8 = arith.constant 0 : index
    %c0_9 = arith.constant 0 : index
    %c0_10 = arith.constant 0 : index
    %30 = vector.load %arg2[%c0_8, %c0_9, %c0_10] : memref<2x16x128xf32, #tpu.memory_space<vmem>>, vector<2x16x128xf32>
    %31 = vector.extract_strided_slice %0 {offsets = [2, 0], sizes = [1, 128], strides = [1, 1]} : vector<8x128xf32> to vector<1x128xf32>
    %32 = vector.shape_cast %31 : vector<1x128xf32> to vector<128xf32>
    %33 = vector.extract_strided_slice %0 {offsets = [3, 0], sizes = [1, 128], strides = [1, 1]} : vector<8x128xf32> to vector<1x128xf32>
    %34 = vector.shape_cast %33 : vector<1x128xf32> to vector<128xf32>
    %cst_11 = arith.constant dense<0.000000e+00> : vector<2x16xf32>
    %35 = vector.multi_reduction <add>, %30, %cst_11 [2] : vector<2x16x128xf32> to vector<2x16xf32>
    %36 = vector.shape_cast %35 : vector<2x16xf32> to vector<2x16x1xf32>
    %cst_12 = arith.constant 1.280000e+02 : f32
    %37 = vector.broadcast %cst_12 : f32 to vector<2x16x1xf32>
    %38 = arith.divf %36, %37 : vector<2x16x1xf32>
    %39 = vector.broadcast %38 : vector<2x16x1xf32> to vector<2x16x128xf32>
    %40 = arith.subf %30, %39 : vector<2x16x128xf32>
    %41 = arith.mulf %40, %40 : vector<2x16x128xf32>
    %cst_13 = arith.constant dense<0.000000e+00> : vector<2x16xf32>
    %42 = vector.multi_reduction <add>, %41, %cst_13 [2] : vector<2x16x128xf32> to vector<2x16xf32>
    %43 = vector.shape_cast %42 : vector<2x16xf32> to vector<2x16x1xf32>
    %cst_14 = arith.constant 1.280000e+02 : f32
    %44 = vector.broadcast %cst_14 : f32 to vector<2x16x1xf32>
    %45 = arith.divf %43, %44 : vector<2x16x1xf32>
    %46 = vector.broadcast %38 : vector<2x16x1xf32> to vector<2x16x128xf32>
    %47 = arith.subf %30, %46 : vector<2x16x128xf32>
    %cst_15 = arith.constant 9.99999974E-6 : f32
    %48 = vector.broadcast %cst_15 : f32 to vector<2x16x1xf32>
    %49 = arith.addf %45, %48 : vector<2x16x1xf32>
    %50 = math.rsqrt %49 : vector<2x16x1xf32>
    %51 = vector.broadcast %50 : vector<2x16x1xf32> to vector<2x16x128xf32>
    %52 = arith.mulf %47, %51 : vector<2x16x128xf32>
    %53 = vector.shape_cast %32 : vector<128xf32> to vector<1x1x128xf32>
    %54 = vector.broadcast %53 : vector<1x1x128xf32> to vector<2x16x128xf32>
    %55 = arith.mulf %52, %54 : vector<2x16x128xf32>
    %56 = vector.shape_cast %34 : vector<128xf32> to vector<1x1x128xf32>
    %57 = vector.broadcast %56 : vector<1x1x128xf32> to vector<2x16x128xf32>
    %58 = arith.addf %55, %57 : vector<2x16x128xf32>
    %59 = vector.shape_cast %29 : vector<2x16x128xf32> to vector<32x128xf32>
    %60 = arith.truncf %59 : vector<32x128xf32> to vector<32x128xbf16>
    %61 = vector.shape_cast %58 : vector<2x16x128xf32> to vector<32x128xf32>
    %62 = arith.truncf %61 : vector<32x128xf32> to vector<32x128xbf16>
    %c0_16 = arith.constant 0 : index
    %c0_17 = arith.constant 0 : index
    %63 = vector.load %arg4[%c0_16, %c0_17] : memref<128x256xbf16, #tpu.memory_space<vmem>>, vector<128x256xbf16>
    %cst_18 = arith.constant dense<0.000000e+00> : vector<32x256xf32>
    %64 = tpu.matmul %60, %63, %cst_18 {dimension_numbers = #tpu.dot_dimension_numbers<[1], [0], [0], [1], [0, 0, 1, 1], [], []>} : vector<32x128xbf16>, vector<128x256xbf16>, vector<32x256xf32> -> vector<32x256xf32>
    %c0_19 = arith.constant 0 : index
    %c0_20 = arith.constant 0 : index
    %65 = vector.load %arg5[%c0_19, %c0_20] : memref<1x256xf32, #tpu.memory_space<vmem>>, vector<1x256xf32>
    %66 = vector.broadcast %65 : vector<1x256xf32> to vector<32x256xf32>
    %67 = arith.addf %64, %66 : vector<32x256xf32>
    %c0_21 = arith.constant 0 : index
    %c0_22 = arith.constant 0 : index
    %68 = vector.load %arg6[%c0_21, %c0_22] : memref<128x128xbf16, #tpu.memory_space<vmem>>, vector<128x128xbf16>
    %cst_23 = arith.constant dense<0.000000e+00> : vector<32x128xf32>
    %69 = tpu.matmul %62, %68, %cst_23 {dimension_numbers = #tpu.dot_dimension_numbers<[1], [0], [0], [1], [0, 0, 1, 1], [], []>} : vector<32x128xbf16>, vector<128x128xbf16>, vector<32x128xf32> -> vector<32x128xf32>
    %70 = vector.extract_strided_slice %0 {offsets = [6, 0], sizes = [1, 128], strides = [1, 1]} : vector<8x128xf32> to vector<1x128xf32>
    %71 = vector.shape_cast %70 : vector<1x128xf32> to vector<128xf32>
    %72 = vector.shape_cast %71 : vector<128xf32> to vector<1x128xf32>
    %73 = vector.broadcast %72 : vector<1x128xf32> to vector<32x128xf32>
    %74 = arith.addf %69, %73 : vector<32x128xf32>
    %75 = vector.shape_cast %67 : vector<32x256xf32> to vector<2x16x256xf32>
    %76 = vector.extract_strided_slice %75 {offsets = [0, 0, 0], sizes = [2, 16, 128], strides = [1, 1, 1]} : vector<2x16x256xf32> to vector<2x16x128xf32>
    %77 = arith.truncf %76 : vector<2x16x128xf32> to vector<2x16x128xbf16>
    %78 = vector.extract_strided_slice %75 {offsets = [0, 0, 128], sizes = [2, 16, 128], strides = [1, 1, 1]} : vector<2x16x256xf32> to vector<2x16x128xf32>
    %79 = arith.truncf %78 : vector<2x16x128xf32> to vector<2x16x128xbf16>
    %80 = vector.shape_cast %74 : vector<32x128xf32> to vector<2x16x128xf32>
    %81 = arith.truncf %80 : vector<2x16x128xf32> to vector<2x16x128xbf16>
    %cst_24 = arith.constant 0.000000e+00 : f32
    %82 = vector.broadcast %cst_24 : f32 to vector<32x128xf32>
    %83 = vector.extract_strided_slice %77 {offsets = [0, 0, 0], sizes = [2, 16, 64], strides = [1, 1, 1]} : vector<2x16x128xbf16> to vector<2x16x64xbf16>
    %84 = vector.extract_strided_slice %79 {offsets = [0, 0, 0], sizes = [2, 16, 64], strides = [1, 1, 1]} : vector<2x16x128xbf16> to vector<2x16x64xbf16>
    %85 = vector.extract_strided_slice %81 {offsets = [0, 0, 0], sizes = [2, 16, 64], strides = [1, 1, 1]} : vector<2x16x128xbf16> to vector<2x16x64xbf16>
    "tpu.trace_start"() <{level = 10 : i32, message = "bnd,bmd->bnm"}> : () -> ()
    %cst_25 = arith.constant dense<0.000000e+00> : vector<2x16x16xf32>
    %86 = tpu.matmul %83, %84, %cst_25 {dimension_numbers = #tpu.dot_dimension_numbers<[2], [2], [1], [1], [0, 0, 0, 1, 1, 1], [0], [0]>} : vector<2x16x64xbf16>, vector<2x16x64xbf16>, vector<2x16x16xf32> -> vector<2x16x16xf32>
    "tpu.trace_stop"() : () -> ()
    %cst_26 = arith.constant dense<0xFF800000> : vector<2x16xf32>
    %87 = vector.multi_reduction <maximumf>, %86, %cst_26 [2] : vector<2x16x16xf32> to vector<2x16xf32>
    %88 = vector.shape_cast %87 : vector<2x16xf32> to vector<2x16x1xf32>
    %89 = vector.broadcast %88 : vector<2x16x1xf32> to vector<2x16x16xf32>
    %90 = arith.subf %86, %89 : vector<2x16x16xf32>
    %91 = math.exp %90 : vector<2x16x16xf32>
    %cst_27 = arith.constant dense<0.000000e+00> : vector<2x16xf32>
    %92 = vector.multi_reduction <add>, %91, %cst_27 [2] : vector<2x16x16xf32> to vector<2x16xf32>
    %93 = vector.shape_cast %92 : vector<2x16xf32> to vector<2x16x1xf32>
    %94 = tpu.reciprocal %93 {approx = true} : vector<2x16x1xf32> -> vector<2x16x1xf32>
    %95 = vector.broadcast %94 : vector<2x16x1xf32> to vector<2x16x16xf32>
    %96 = arith.mulf %91, %95 : vector<2x16x16xf32>
    %97 = arith.truncf %96 : vector<2x16x16xf32> to vector<2x16x16xbf16>
    "tpu.trace_start"() <{level = 10 : i32, message = "bnm,bmd->bnd"}> : () -> ()
    %cst_28 = arith.constant dense<0.000000e+00> : vector<2x16x64xf32>
    %98 = tpu.matmul %97, %85, %cst_28 {dimension_numbers = #tpu.dot_dimension_numbers<[2], [1], [1], [2], [0, 0, 0, 1, 1, 2], [0], [0]>} : vector<2x16x16xbf16>, vector<2x16x64xbf16>, vector<2x16x64xf32> -> vector<2x16x64xf32>
    "tpu.trace_stop"() : () -> ()
    %99 = vector.shape_cast %98 : vector<2x16x64xf32> to vector<32x64xf32>
    %100 = arith.truncf %99 : vector<32x64xf32> to vector<32x64xbf16>
    %c0_29 = arith.constant 0 : index
    %c0_30 = arith.constant 0 : index
    %101 = vector.load %arg7[%c0_29, %c0_30] : memref<128x128xbf16, #tpu.memory_space<vmem>>, vector<64x128xbf16>
    %cst_31 = arith.constant dense<0.000000e+00> : vector<32x128xf32>
    %102 = tpu.matmul %100, %101, %cst_31 {dimension_numbers = #tpu.dot_dimension_numbers<[1], [0], [0], [1], [0, 0, 1, 1], [], []>} : vector<32x64xbf16>, vector<64x128xbf16>, vector<32x128xf32> -> vector<32x128xf32>
    %103 = arith.addf %82, %102 : vector<32x128xf32>
    %104 = vector.extract_strided_slice %77 {offsets = [0, 0, 64], sizes = [2, 16, 64], strides = [1, 1, 1]} : vector<2x16x128xbf16> to vector<2x16x64xbf16>
    %105 = vector.extract_strided_slice %79 {offsets = [0, 0, 64], sizes = [2, 16, 64], strides = [1, 1, 1]} : vector<2x16x128xbf16> to vector<2x16x64xbf16>
    %106 = vector.extract_strided_slice %81 {offsets = [0, 0, 64], sizes = [2, 16, 64], strides = [1, 1, 1]} : vector<2x16x128xbf16> to vector<2x16x64xbf16>
    "tpu.trace_start"() <{level = 10 : i32, message = "bnd,bmd->bnm"}> : () -> ()
    %cst_32 = arith.constant dense<0.000000e+00> : vector<2x16x16xf32>
    %107 = tpu.matmul %104, %105, %cst_32 {dimension_numbers = #tpu.dot_dimension_numbers<[2], [2], [1], [1], [0, 0, 0, 1, 1, 1], [0], [0]>} : vector<2x16x64xbf16>, vector<2x16x64xbf16>, vector<2x16x16xf32> -> vector<2x16x16xf32>
    "tpu.trace_stop"() : () -> ()
    %cst_33 = arith.constant dense<0xFF800000> : vector<2x16xf32>
    %108 = vector.multi_reduction <maximumf>, %107, %cst_33 [2] : vector<2x16x16xf32> to vector<2x16xf32>
    %109 = vector.shape_cast %108 : vector<2x16xf32> to vector<2x16x1xf32>
    %110 = vector.broadcast %109 : vector<2x16x1xf32> to vector<2x16x16xf32>
    %111 = arith.subf %107, %110 : vector<2x16x16xf32>
    %112 = math.exp %111 : vector<2x16x16xf32>
    %cst_34 = arith.constant dense<0.000000e+00> : vector<2x16xf32>
    %113 = vector.multi_reduction <add>, %112, %cst_34 [2] : vector<2x16x16xf32> to vector<2x16xf32>
    %114 = vector.shape_cast %113 : vector<2x16xf32> to vector<2x16x1xf32>
    %115 = tpu.reciprocal %114 {approx = true} : vector<2x16x1xf32> -> vector<2x16x1xf32>
    %116 = vector.broadcast %115 : vector<2x16x1xf32> to vector<2x16x16xf32>
    %117 = arith.mulf %112, %116 : vector<2x16x16xf32>
    %118 = arith.truncf %117 : vector<2x16x16xf32> to vector<2x16x16xbf16>
    "tpu.trace_start"() <{level = 10 : i32, message = "bnm,bmd->bnd"}> : () -> ()
    %cst_35 = arith.constant dense<0.000000e+00> : vector<2x16x64xf32>
    %119 = tpu.matmul %118, %106, %cst_35 {dimension_numbers = #tpu.dot_dimension_numbers<[2], [1], [1], [2], [0, 0, 0, 1, 1, 2], [0], [0]>} : vector<2x16x16xbf16>, vector<2x16x64xbf16>, vector<2x16x64xf32> -> vector<2x16x64xf32>
    "tpu.trace_stop"() : () -> ()
    %120 = vector.shape_cast %119 : vector<2x16x64xf32> to vector<32x64xf32>
    %121 = arith.truncf %120 : vector<32x64xf32> to vector<32x64xbf16>
    %c64 = arith.constant 64 : index
    %c0_36 = arith.constant 0 : index
    %122 = vector.load %arg7[%c64, %c0_36] : memref<128x128xbf16, #tpu.memory_space<vmem>>, vector<64x128xbf16>
    %cst_37 = arith.constant dense<0.000000e+00> : vector<32x128xf32>
    %123 = tpu.matmul %121, %122, %cst_37 {dimension_numbers = #tpu.dot_dimension_numbers<[1], [0], [0], [1], [0, 0, 1, 1], [], []>} : vector<32x64xbf16>, vector<64x128xbf16>, vector<32x128xf32> -> vector<32x128xf32>
    %124 = arith.addf %103, %123 : vector<32x128xf32>
    %125 = vector.extract_strided_slice %0 {offsets = [7, 0], sizes = [1, 128], strides = [1, 1]} : vector<8x128xf32> to vector<1x128xf32>
    %126 = vector.shape_cast %125 : vector<1x128xf32> to vector<128xf32>
    %127 = vector.shape_cast %126 : vector<128xf32> to vector<1x128xf32>
    %128 = vector.broadcast %127 : vector<1x128xf32> to vector<32x128xf32>
    %129 = arith.addf %124, %128 : vector<32x128xf32>
    %130 = vector.shape_cast %129 : vector<32x128xf32> to vector<2x16x128xf32>
    %131 = vector.extract_strided_slice %0 {offsets = [4, 0], sizes = [1, 128], strides = [1, 1]} : vector<8x128xf32> to vector<1x128xf32>
    %132 = vector.shape_cast %131 : vector<1x128xf32> to vector<128xf32>
    %133 = vector.extract_strided_slice %0 {offsets = [5, 0], sizes = [1, 128], strides = [1, 1]} : vector<8x128xf32> to vector<1x128xf32>
    %134 = vector.shape_cast %133 : vector<1x128xf32> to vector<128xf32>
    %cst_38 = arith.constant dense<0.000000e+00> : vector<2x16xf32>
    %135 = vector.multi_reduction <add>, %130, %cst_38 [2] : vector<2x16x128xf32> to vector<2x16xf32>
    %136 = vector.shape_cast %135 : vector<2x16xf32> to vector<2x16x1xf32>
    %cst_39 = arith.constant 1.280000e+02 : f32
    %137 = vector.broadcast %cst_39 : f32 to vector<2x16x1xf32>
    %138 = arith.divf %136, %137 : vector<2x16x1xf32>
    %139 = vector.broadcast %138 : vector<2x16x1xf32> to vector<2x16x128xf32>
    %140 = arith.subf %130, %139 : vector<2x16x128xf32>
    %141 = arith.mulf %140, %140 : vector<2x16x128xf32>
    %cst_40 = arith.constant dense<0.000000e+00> : vector<2x16xf32>
    %142 = vector.multi_reduction <add>, %141, %cst_40 [2] : vector<2x16x128xf32> to vector<2x16xf32>
    %143 = vector.shape_cast %142 : vector<2x16xf32> to vector<2x16x1xf32>
    %cst_41 = arith.constant 1.280000e+02 : f32
    %144 = vector.broadcast %cst_41 : f32 to vector<2x16x1xf32>
    %145 = arith.divf %143, %144 : vector<2x16x1xf32>
    %146 = vector.broadcast %138 : vector<2x16x1xf32> to vector<2x16x128xf32>
    %147 = arith.subf %130, %146 : vector<2x16x128xf32>
    %cst_42 = arith.constant 9.99999974E-6 : f32
    %148 = vector.broadcast %cst_42 : f32 to vector<2x16x1xf32>
    %149 = arith.addf %145, %148 : vector<2x16x1xf32>
    %150 = math.rsqrt %149 : vector<2x16x1xf32>
    %151 = vector.broadcast %150 : vector<2x16x1xf32> to vector<2x16x128xf32>
    %152 = arith.mulf %147, %151 : vector<2x16x128xf32>
    %153 = vector.shape_cast %132 : vector<128xf32> to vector<1x1x128xf32>
    %154 = vector.broadcast %153 : vector<1x1x128xf32> to vector<2x16x128xf32>
    %155 = arith.mulf %152, %154 : vector<2x16x128xf32>
    %156 = vector.shape_cast %134 : vector<128xf32> to vector<1x1x128xf32>
    %157 = vector.broadcast %156 : vector<1x1x128xf32> to vector<2x16x128xf32>
    %158 = arith.addf %155, %157 : vector<2x16x128xf32>
    %159 = arith.mulf %158, %158 : vector<2x16x128xf32>
    %cst_43 = arith.constant dense<0.000000e+00> : vector<2x128xf32>
    %160 = vector.multi_reduction <add>, %159, %cst_43 [1] : vector<2x16x128xf32> to vector<2x128xf32>
    %161 = vector.shape_cast %160 : vector<2x128xf32> to vector<2x1x128xf32>
    %162 = math.sqrt %161 : vector<2x1x128xf32>
    %cst_44 = arith.constant 9.99999996E-13 : f32
    %163 = vector.broadcast %cst_44 : f32 to vector<2x1x128xf32>
    %164 = arith.maximumf %162, %163 : vector<2x1x128xf32>
    %165 = vector.broadcast %164 : vector<2x1x128xf32> to vector<2x16x128xf32>
    %166 = arith.divf %158, %165 : vector<2x16x128xf32>
    %c0_45 = arith.constant 0 : index
    %c0_46 = arith.constant 0 : index
    %c0_47 = arith.constant 0 : index
    %167 = vector.load %arg8[%c0_45, %c0_46, %c0_47] : memref<2x16x128xf32, #tpu.memory_space<vmem>>, vector<2x16x128xf32>
    tpu.vector_store %arg8[%c0_45, %c0_46, %c0_47], %166 {strides = array<i32>} : memref<2x16x128xf32, #tpu.memory_space<vmem>>, vector<2x16x128xf32>,
    return
  }
  func.func @transform_0(%arg0: i32) -> (i32, i32, i32) {
    %c0_i32 = arith.constant 0 : i32
    %c0_i32_0 = arith.constant 0 : i32
    %c0_i32_1 = arith.constant 0 : i32
    return %arg0, %c0_i32, %c0_i32_0 : i32, i32, i32
  }
  func.func @transform_1(%arg0: i32) -> (i32, i32, i32) {
    %c0_i32 = arith.constant 0 : i32
    %c0_i32_0 = arith.constant 0 : i32
    %c0_i32_1 = arith.constant 0 : i32
    return %arg0, %c0_i32, %c0_i32_0 : i32, i32, i32
  }
  func.func @transform_2(%arg0: i32) -> (i32, i32) {
    %c0_i32 = arith.constant 0 : i32
    %c0_i32_0 = arith.constant 0 : i32
    %c0_i32_1 = arith.constant 0 : i32
    return %c0_i32, %c0_i32_0 : i32, i32
  }
  func.func @transform_3(%arg0: i32) -> (i32, i32) {
    %c0_i32 = arith.constant 0 : i32
    %c0_i32_0 = arith.constant 0 : i32
    %c0_i32_1 = arith.constant 0 : i32
    return %c0_i32, %c0_i32_0 : i32, i32
  }
  func.func @transform_4(%arg0: i32) -> (i32, i32) {
    %c0_i32 = arith.constant 0 : i32
    %c0_i32_0 = arith.constant 0 : i32
    %c0_i32_1 = arith.constant 0 : i32
    return %c0_i32, %c0_i32_0 : i32, i32
  }
  func.func @transform_5(%arg0: i32) -> (i32, i32) {
    %c0_i32 = arith.constant 0 : i32
    %c0_i32_0 = arith.constant 0 : i32
    %c0_i32_1 = arith.constant 0 : i32
    return %c0_i32, %c0_i32_0 : i32, i32
  }
  func.func @transform_6(%arg0: i32) -> (i32, i32) {
    %c0_i32 = arith.constant 0 : i32
    %c0_i32_0 = arith.constant 0 : i32
    %c0_i32_1 = arith.constant 0 : i32
    return %c0_i32, %c0_i32_0 : i32, i32
  }
  func.func @transform_7(%arg0: i32) -> (i32, i32, i32) {
    %c0_i32 = arith.constant 0 : i32
    %c0_i32_0 = arith.constant 0 : i32
    %c0_i32_1 = arith.constant 0 : i32
    return %arg0, %c0_i32, %c0_i32_0 : i32, i32, i32
  }
}

</mosaic_0001>

<llo_original>
// kernel: risk_model_forward.1
$region0: #{risk_model_forward.1}
  #allocation0 [shape = 'u32[]', space=smem, size = 0x4, offset = 0x4, fixed_abs, tag = 'smem constant byte address 0x4 - core index']
  #allocation1 [shape = 'u32[144,128]{1,0:T(1,128)}', space=vmem, size = 0x12000, scoped, tag = 'internal scratch']
  %s0 = inlined_call_operand.vmem [shape: f32[2,16,128], index: 0, kind: input, shape index: {}]
  %s1 = inlined_call_operand.hbm [shape: f32[2,16,128], index: 1, kind: input, shape index: {}]
  %s2 = inlined_call_operand.vmem [shape: f32[8,128], index: 2, kind: input, shape index: {}]
  %s3 = inlined_call_operand.hbm [shape: bf16[128,256], index: 3, kind: input, shape index: {}]
  %s4 = inlined_call_operand.hbm [shape: f32[1,256], index: 4, kind: input, shape index: {}]
  %s5 = inlined_call_operand.hbm [shape: bf16[128,128], index: 5, kind: input, shape index: {}]
  %s6 = inlined_call_operand.hbm [shape: bf16[128,128], index: 6, kind: input, shape index: {}]
  %s7 = inlined_call_operand.hbm [shape: f32[2,16,128], index: 7, kind: output, shape index: {}]
  %s8 = sld [smem:[#allocation0]]
  $region58: #{risk_model_forward.1} parent=0
    _
  %s10 = ssub.s32 1, %s8
  %s11 = scalar_select 0, %s10, %s8
  $region1: #{risk_model_forward.1} parent=0
    #allocation2 [shape = 'u8[16384]{0}', space=vmem, size = 0x4000, scoped, tag = 'input window, operand 1, single buffered']
    #allocation3 [shape = 's32[1]{0}', space=sflag, size = 0x4, scoped, tag = 'scoped memory for risk_model_forward.1']
    #allocation4 [shape = 's32[1]{0}', space=sflag, size = 0x4, scoped, tag = 'scoped memory for risk_model_forward.1']
    #allocation5 [shape = 'u8[65536]{0}', space=vmem, size = 0x10000, scoped, tag = 'input window, operand 3, single buffered']
    #allocation6 [shape = 's32[1]{0}', space=sflag, size = 0x4, scoped, tag = 'scoped memory for risk_model_forward.1']
    #allocation7 [shape = 'u8[1024]{0}', space=vmem, size = 0x400, scoped, tag = 'input window, operand 4, single buffered']
    #allocation8 [shape = 'u8[32768]{0}', space=vmem, size = 0x8000, scoped, tag = 'input window, operand 5, single buffered']
    #allocation9 [shape = 's32[1]{0}', space=sflag, size = 0x4, scoped, tag = 'scoped memory for risk_model_forward.1']
    #allocation10 [shape = 'u8[32768]{0}', space=vmem, size = 0x8000, scoped, tag = 'input window, operand 6, single buffered']
    #allocation11 [shape = 'u8[16384]{0}', space=vmem, size = 0x4000, scoped, tag = 'output window, operand 0, single buffered']
    %12 = vsyncpa [#allocation3], 0
    %13 = vsyncpa [#allocation6], 0
    %14 = vsyncpa [#allocation9], 0
    %15 = vsyncpa [#allocation4], 0
    // Predicated region
    $region2: #{risk_model_forward.1} parent=1 // pred_check
      _
    $region3: #{risk_model_forward.1} parent=1 // pred_check_branch
      %17 = sbr.rel (0) target = $region5
    $region4: #{risk_model_forward.1} parent=1 // pred_region
      _
    $region5: #{risk_model_forward.1} parent=1 // pred_fallthru
      _
    // Predicated region
    $region6: #{risk_model_forward.1} parent=1 // pred_check
      _
    $region7: #{risk_model_forward.1} parent=1 // pred_check_branch
      %19 = sbr.rel (0) target = $region9
    $region8: #{risk_model_forward.1} parent=1 // pred_region
      %s21 = ssub.s32 512, 512
      %22 = vsyncadd [#allocation3], %s21
      %s23 = sshll.u32 [#allocation2], 4
      %s24 = int_to_ptr.vmem [resolvable:$true] %s23
      %29 = dma.hbm_to_vmem [thread:$0]  %s1, 512, %s24, [#allocation3], 128, 128, 8
    $region9: #{risk_model_forward.1} parent=1 // pred_fallthru
      _
    // Predicated region
    $region10: #{risk_model_forward.1} parent=1 // pred_check
      _
    $region11: #{risk_model_forward.1} parent=1 // pred_check_branch
      %31 = sbr.rel (0) target = $region13
    $region12: #{risk_model_forward.1} parent=1 // pred_region
      _
    $region13: #{risk_model_forward.1} parent=1 // pred_fallthru
      _
    // Predicated region
    $region14: #{risk_model_forward.1} parent=1 // pred_check
      _
    $region15: #{risk_model_forward.1} parent=1 // pred_check_branch
      %33 = sbr.rel (0) target = $region17
    $region16: #{risk_model_forward.1} parent=1 // pred_region
      %s35 = ssub.s32 2048, 2048
      %36 = vsyncadd [#allocation6], %s35
      %s37 = sshll.u32 [#allocation5], 4
      %s38 = int_to_ptr.vmem [resolvable:$true] %s37
      %43 = dma.hbm_to_vmem [thread:$0]  %s3, 2048, %s38, [#allocation6], 128, 128, 8
    $region17: #{risk_model_forward.1} parent=1 // pred_fallthru
      _
    // Predicated region
    $region18: #{risk_model_forward.1} parent=1 // pred_check
      _
    $region19: #{risk_model_forward.1} parent=1 // pred_check_branch
      %45 = sbr.rel (0) target = $region21
    $region20: #{risk_model_forward.1} parent=1 // pred_region
      %s47 = ssub.s32 32, 32
      %48 = vsyncadd [#allocation6], %s47
      %s50 = sshll.u32 [#allocation7], 4
      %s51 = int_to_ptr.vmem [resolvable:$true] %s50
      %53 = dma.hbm_to_vmem [thread:$0]  %s4, 32, %s51, [#allocation6]
    $region21: #{risk_model_forward.1} parent=1 // pred_fallthru
      _
    // Predicated region
    $region22: #{risk_model_forward.1} parent=1 // pred_check
      _
    $region23: #{risk_model_forward.1} parent=1 // pred_check_branch
      %55 = sbr.rel (0) target = $region25
    $region24: #{risk_model_forward.1} parent=1 // pred_region
      %s57 = ssub.s32 1024, 1024
      %58 = vsyncadd [#allocation9], %s57
      %s59 = sshll.u32 [#allocation8], 4
      %s60 = int_to_ptr.vmem [resolvable:$true] %s59
      %65 = dma.hbm_to_vmem [thread:$0]  %s5, 1024, %s60, [#allocation9], 64, 64, 4
    $region25: #{risk_model_forward.1} parent=1 // pred_fallthru
      _
    // Predicated region
    $region26: #{risk_model_forward.1} parent=1 // pred_check
      _
    $region27: #{risk_model_forward.1} parent=1 // pred_check_branch
      %67 = sbr.rel (0) target = $region29
    $region28: #{risk_model_forward.1} parent=1 // pred_region
      %s69 = ssub.s32 1024, 1024
      %70 = vsyncadd [#allocation9], %s69
      %s71 = sshll.u32 [#allocation10], 4
      %s72 = int_to_ptr.vmem [resolvable:$true] %s71
      %77 = dma.hbm_to_vmem [thread:$0]  %s6, 1024, %s72, [#allocation9], 64, 64, 4
    $region29: #{risk_model_forward.1} parent=1 // pred_fallthru
      _
    // Predicated region
    $region30: #{risk_model_forward.1} parent=1 // pred_check
      _
    $region31: #{risk_model_forward.1} parent=1 // pred_check_branch
      %79 = sbr.rel (0) target = $region33
    $region32: #{risk_model_forward.1} parent=1 // pred_region
      %80 = dma.done [#allocation3], 512
    $region33: #{risk_model_forward.1} parent=1 // pred_fallthru
      _
    // Predicated region
    $region34: #{risk_model_forward.1} parent=1 // pred_check
      _
    $region35: #{risk_model_forward.1} parent=1 // pred_check_branch
      %82 = sbr.rel (0) target = $region37
    $region36: #{risk_model_forward.1} parent=1 // pred_region
      %83 = dma.done [#allocation6], 2048
    $region37: #{risk_model_forward.1} parent=1 // pred_fallthru
      _
    // Predicated region
    $region38: #{risk_model_forward.1} parent=1 // pred_check
      _
    $region39: #{risk_model_forward.1} parent=1 // pred_check_branch
      %85 = sbr.rel (0) target = $region41
    $region40: #{risk_model_forward.1} parent=1 // pred_region
      %86 = dma.done [#allocation6], 32
    $region41: #{risk_model_forward.1} parent=1 // pred_fallthru
      _
    // Predicated region
    $region42: #{risk_model_forward.1} parent=1 // pred_check
      _
    $region43: #{risk_model_forward.1} parent=1 // pred_check_branch
      %88 = sbr.rel (0) target = $region45
    $region44: #{risk_model_forward.1} parent=1 // pred_region
      %89 = dma.done [#allocation9], 1024
    $region45: #{risk_model_forward.1} parent=1 // pred_fallthru
      _
    // Predicated region
    $region46: #{risk_model_forward.1} parent=1 // pred_check
      _
    $region47: #{risk_model_forward.1} parent=1 // pred_check_branch
      %91 = sbr.rel (0) target = $region49
    $region48: #{risk_model_forward.1} parent=1 // pred_region
      %92 = dma.done [#allocation9], 1024
    $region49: #{risk_model_forward.1} parent=1 // pred_fallthru
      _
    %v94 = vld [vmem:[%s2] sm:$0xff]
    %v95 = vld [vmem:[%s0] sm:$0xff]
    %v96 = vld [vmem:[%s0 + $0x8] sm:$0xff]
    %v97 = vld [vmem:[%s0 + $0x10] sm:$0xff]
    %v98 = vld [vmem:[%s0 + $0x18] sm:$0xff]
    %99 = vadd.xlane.f32.xlu0 %v95
    %v100 = vpop.xlane.xlu0 %99
    %101 = vadd.xlane.f32.xlu0 %v96
    %v102 = vpop.xlane.xlu0 %101
    %103 = vadd.xlane.f32.xlu0 %v97
    %v104 = vpop.xlane.xlu0 %103
    %105 = vadd.xlane.f32.xlu0 %v98
    %v106 = vpop.xlane.xlu0 %105
    %v107 = vrcp.pop 128.0
    %v108 = vmul.f32 %v100, %v107
    %v109 = vmul.f32 %v102, %v107
    %v110 = vmul.f32 %v104, %v107
    %v111 = vmul.f32 %v106, %v107
    %v112 = vsub.f32 %v95, %v108
    %v113 = vsub.f32 %v96, %v109
    %v114 = vsub.f32 %v97, %v110
    %v115 = vsub.f32 %v98, %v111
    %v116 = vmul.f32 %v112, %v112
    %v117 = vmul.f32 %v113, %v113
    %v118 = vmul.f32 %v114, %v114
    %v119 = vmul.f32 %v115, %v115
    %120 = vadd.xlane.f32.xlu0 %v116
    %v121 = vpop.xlane.xlu0 %120
    %122 = vadd.xlane.f32.xlu0 %v117
    %v123 = vpop.xlane.xlu0 %122
    %124 = vadd.xlane.f32.xlu0 %v118
    %v125 = vpop.xlane.xlu0 %124
    %126 = vadd.xlane.f32.xlu0 %v119
    %v127 = vpop.xlane.xlu0 %126
    %v128 = vmul.f32 %v121, %v107
    %v129 = vmul.f32 %v123, %v107
    %v130 = vmul.f32 %v125, %v107
    %v131 = vmul.f32 %v127, %v107
    %v132 = vadd.f32 %v128, 1e-05
    %v133 = vadd.f32 %v129, 1e-05
    %v134 = vadd.f32 %v130, 1e-05
    %v135 = vadd.f32 %v131, 1e-05
    %v136 = vrsqrt.pop %v132
    %v137 = vrsqrt.pop %v133
    %v138 = vrsqrt.pop %v134
    %v139 = vrsqrt.pop %v135
    %v140 = vmul.f32 %v112, %v136
    %v141 = vmul.f32 %v113, %v137
    %v142 = vmul.f32 %v114, %v138
    %v143 = vmul.f32 %v115, %v139
    %v144 = vlaneseq
    %v145 = vshrl.u32 %v144, 7
    %v146 = vsub.s32 0, %v145
    %v147 = vrot.slane %v94, %v146
    %v148 = vmul.f32 %v140, %v147
    %v149 = vmul.f32 %v141, %v147
    %v150 = vmul.f32 %v142, %v147
    %v151 = vmul.f32 %v143, %v147
    %v152 = vlaneseq
    %v153 = vshrl.u32 %v152, 7
    %v154 = vsub.s32 1, %v153
    %v155 = vrot.slane %v94, %v154
    %v156 = vadd.f32 %v148, %v155
    %v157 = vadd.f32 %v149, %v155
    %v158 = vadd.f32 %v150, %v155
    %v159 = vadd.f32 %v151, %v155
    %v160 = vld [vmem:[#allocation2] sm:$0xff]
    %v161 = vld [vmem:[#allocation2 + $0x8] sm:$0xff]
    %v162 = vld [vmem:[#allocation2 + $0x10] sm:$0xff]
    %v163 = vld [vmem:[#allocation2 + $0x18] sm:$0xff]
    %164 = vadd.xlane.f32.xlu0 %v160
    %v165 = vpop.xlane.xlu0 %164
    %166 = vadd.xlane.f32.xlu0 %v161
    %v167 = vpop.xlane.xlu0 %166
    %168 = vadd.xlane.f32.xlu0 %v162
    %v169 = vpop.xlane.xlu0 %168
    %170 = vadd.xlane.f32.xlu0 %v163
    %v171 = vpop.xlane.xlu0 %170
    %v172 = vmul.f32 %v165, %v107
    %v173 = vmul.f32 %v167, %v107
    %v174 = vmul.f32 %v169, %v107
    %v175 = vmul.f32 %v171, %v107
    %v176 = vsub.f32 %v160, %v172
    %v177 = vsub.f32 %v161, %v173
    %v178 = vsub.f32 %v162, %v174
    %v179 = vsub.f32 %v163, %v175
    %v180 = vmul.f32 %v176, %v176
    %v181 = vmul.f32 %v177, %v177
    %v182 = vmul.f32 %v178, %v178
    %v183 = vmul.f32 %v179, %v179
    %184 = vadd.xlane.f32.xlu0 %v180
    %v185 = vpop.xlane.xlu0 %184
    %186 = vadd.xlane.f32.xlu0 %v181
    %v187 = vpop.xlane.xlu0 %186
    %188 = vadd.xlane.f32.xlu0 %v182
    %v189 = vpop.xlane.xlu0 %188
    %190 = vadd.xlane.f32.xlu0 %v183
    %v191 = vpop.xlane.xlu0 %190
    %v192 = vmul.f32 %v185, %v107
    %v193 = vmul.f32 %v187, %v107
    %v194 = vmul.f32 %v189, %v107
    %v195 = vmul.f32 %v191, %v107
    %v196 = vadd.f32 %v192, 1e-05
    %v197 = vadd.f32 %v193, 1e-05
    %v198 = vadd.f32 %v194, 1e-05
    %v199 = vadd.f32 %v195, 1e-05
    %v200 = vrsqrt.pop %v196
    %v201 = vrsqrt.pop %v197
    %v202 = vrsqrt.pop %v198
    %v203 = vrsqrt.pop %v199
    %v204 = vmul.f32 %v176, %v200
    %v205 = vmul.f32 %v177, %v201
    %v206 = vmul.f32 %v178, %v202
    %v207 = vmul.f32 %v179, %v203
    %v208 = vlaneseq
    %v209 = vshrl.u32 %v208, 7
    %v210 = vsub.s32 2, %v209
    %v211 = vrot.slane %v94, %v210
    %v212 = vmul.f32 %v204, %v211
    %v213 = vmul.f32 %v205, %v211
    %v214 = vmul.f32 %v206, %v211
    %v215 = vmul.f32 %v207, %v211
    %v216 = vlaneseq
    %v217 = vshrl.u32 %v216, 7
    %v218 = vsub.s32 3, %v217
    %v219 = vrot.slane %v94, %v218
    %v220 = vadd.f32 %v212, %v219
    %v221 = vadd.f32 %v213, %v219
    %v222 = vadd.f32 %v214, %v219
    %v223 = vadd.f32 %v215, %v219
    %v224 = vpack.c.bf16 %v157, %v156
    %v225 = vpack.c.bf16 %v159, %v158
    %v226 = vpack.c.bf16 %v221, %v220
    %v227 = vpack.c.bf16 %v223, %v222
    %v228 = vld [vmem:[#allocation5] sm:$0xff]
    %v229 = vld [vmem:[#allocation5 + $0x8] sm:$0xff]
    %v230 = vld [vmem:[#allocation5 + $0x10] sm:$0xff]
    %v231 = vld [vmem:[#allocation5 + $0x18] sm:$0xff]
    %v232 = vld [vmem:[#allocation5 + $0x20] sm:$0xff]
    %v233 = vld [vmem:[#allocation5 + $0x28] sm:$0xff]
    %v234 = vld [vmem:[#allocation5 + $0x30] sm:$0xff]
    %v235 = vld [vmem:[#allocation5 + $0x38] sm:$0xff]
    %v236 = vld [vmem:[#allocation5 + $0x40] sm:$0xff]
    %v237 = vld [vmem:[#allocation5 + $0x48] sm:$0xff]
    %v238 = vld [vmem:[#allocation5 + $0x50] sm:$0xff]
    %v239 = vld [vmem:[#allocation5 + $0x58] sm:$0xff]
    %v240 = vld [vmem:[#allocation5 + $0x60] sm:$0xff]
    %v241 = vld [vmem:[#allocation5 + $0x68] sm:$0xff]
    %v242 = vld [vmem:[#allocation5 + $0x70] sm:$0xff]
    %v243 = vld [vmem:[#allocation5 + $0x78] sm:$0xff]
    %v244 = vld [vmem:[#allocation7] sm:$0x3]
    %v246 = vlaneseq
    %v247 = vshrl.u32 %v246, 7
    %v248 = vsub.s32 0, %v247
    %v249 = vrot.slane %v244, %v248
    %v250 = vlaneseq
    %v251 = vshrl.u32 %v250, 7
    %v252 = vsub.s32 1, %v251
    %v253 = vrot.slane %v244, %v252
    %v272 = vunpack.c.l.b16 %v228
    %v273 = vunpack.c.h.b16 %v228
    %v274 = vunpack.c.l.b16 %v229
    %v275 = vunpack.c.h.b16 %v229
    %v276 = vunpack.c.l.b16 %v230
    %v277 = vunpack.c.h.b16 %v230
    %v278 = vunpack.c.l.b16 %v231
    %v279 = vunpack.c.h.b16 %v231
    %v280 = vunpack.c.l.b16 %v232
    %v281 = vunpack.c.h.b16 %v232
    %v282 = vunpack.c.l.b16 %v233
    %v283 = vunpack.c.h.b16 %v233
    %v284 = vunpack.c.l.b16 %v234
    %v285 = vunpack.c.h.b16 %v234
    %v286 = vunpack.c.l.b16 %v235
    %v287 = vunpack.c.h.b16 %v235
    %v288 = vunpack.c.l.b16 %v236
    %v289 = vunpack.c.h.b16 %v236
    %v290 = vunpack.c.l.b16 %v237
    %v291 = vunpack.c.h.b16 %v237
    %v292 = vunpack.c.l.b16 %v238
    %v293 = vunpack.c.h.b16 %v238
    %v294 = vunpack.c.l.b16 %v239
    %v295 = vunpack.c.h.b16 %v239
    %v296 = vunpack.c.l.b16 %v240
    %v297 = vunpack.c.h.b16 %v240
    %v298 = vunpack.c.l.b16 %v241
    %v299 = vunpack.c.h.b16 %v241
    %v300 = vunpack.c.l.b16 %v242
    %v301 = vunpack.c.h.b16 %v242
    %v302 = vunpack.c.l.b16 %v243
    %v303 = vunpack.c.h.b16 %v243
    %v304 = vpack.c.b16 %v274, %v272
    %v305 = vpack.c.b16 %v275, %v273
    %v306 = vpack.c.b16 %v278, %v276
    %v307 = vpack.c.b16 %v279, %v277
    %v308 = vpack.c.b16 %v282, %v280
    %v309 = vpack.c.b16 %v283, %v281
    %v310 = vpack.c.b16 %v286, %v284
    %v311 = vpack.c.b16 %v287, %v285
    %v312 = vpack.c.b16 %v290, %v288
    %v313 = vpack.c.b16 %v291, %v289
    %v314 = vpack.c.b16 %v294, %v292
    %v315 = vpack.c.b16 %v295, %v293
    %v316 = vpack.c.b16 %v298, %v296
    %v317 = vpack.c.b16 %v299, %v297
    %v318 = vpack.c.b16 %v302, %v300
    %v319 = vpack.c.b16 %v303, %v301
    %336 = vmatprep.subr.bf16.mxu0 %v319
    %337 = vmatpush1.bf16.msra.mxu0 %v318
    %338 = vmatprep.subr.bf16.mxu0 %v317
    %339 = vmatpush1.bf16.msra.mxu0 %v316
    %340 = vmatprep.subr.bf16.mxu0 %v315
    %341 = vmatpush1.bf16.msra.mxu0 %v314
    %342 = vmatprep.subr.bf16.mxu0 %v313
    %343 = vmatpush1.bf16.msra.mxu0 %v312
    %344 = vmatprep.subr.bf16.mxu0 %v311
    %345 = vmatpush1.bf16.msra.mxu0 %v310
    %346 = vmatprep.subr.bf16.mxu0 %v309
    %347 = vmatpush1.bf16.msra.mxu0 %v308
    %348 = vmatprep.subr.bf16.mxu0 %v307
    %349 = vmatpush1.bf16.msra.mxu0 %v306
    %350 = vmatprep.subr.bf16.mxu0 %v305
    %351 = vmatpush1.bf16.msra.mxu0 %v304
    %352 = vmatprep.subr.bf16.mxu0 0
    %353 = vmatpush2.bf16.msra.mxu0 0
    %354 = vmatprep.subr.bf16.mxu0 0
    %355 = vmatpush2.bf16.msra.mxu0 0
    %356 = vmatprep.subr.bf16.mxu0 0
    %357 = vmatpush2.bf16.msra.mxu0 0
    %358 = vmatprep.subr.bf16.mxu0 0
    %359 = vmatpush2.bf16.msra.mxu0 0
    %360 = vmatprep.subr.bf16.mxu0 0
    %361 = vmatpush2.bf16.msra.mxu0 0
    %362 = vmatprep.subr.bf16.mxu0 0
    %363 = vmatpush2.bf16.msra.mxu0 0
    %364 = vmatprep.subr.bf16.mxu0 0
    %365 = vmatpush2.bf16.msra.mxu0 0
    %366 = vmatprep.subr.bf16.mxu0 0
    %367 = vmatpush2.bf16.msra.mxu0 0
    %368 = vmatprep.mubr.bf16.mxu0 0
    %369 = vmatmul.mubr.bf16.gmra.mxu0 %v224
    %v370 = vpop.f32.mrf.mxu0
    %v371 = vadd.f32 %v249, %v370
    %v372 = vpop.f32.mrf.mxu0
    %v373 = vadd.f32 %v253, %v372
    %v374 = vpop.f32.mrf.mxu0
    %v375 = vadd.f32 %v249, %v374
    %v376 = vpop.f32.mrf.mxu0
    %v377 = vadd.f32 %v253, %v376
    %378 = vmatprep.mubr.bf16.mxu0 0
    %379 = vmatmul.mubr.bf16.gmra.mxu0 %v225
    %v380 = vpop.f32.mrf.mxu0
    %v381 = vadd.f32 %v249, %v380
    %v382 = vpop.f32.mrf.mxu0
    %v383 = vadd.f32 %v253, %v382
    %v384 = vpop.f32.mrf.mxu0
    %v385 = vadd.f32 %v249, %v384
    %v386 = vpop.f32.mrf.mxu0
    %v387 = vadd.f32 %v253, %v386
    %388 = vdwg.mxu0
    %v389 = vld [vmem:[#allocation8] sm:$0xf]
    %v390 = vld [vmem:[#allocation8 + $0x4] sm:$0xf]
    %v391 = vld [vmem:[#allocation8 + $0x8] sm:$0xf]
    %v392 = vld [vmem:[#allocation8 + $0xc] sm:$0xf]
    %v393 = vld [vmem:[#allocation8 + $0x10] sm:$0xf]
    %v394 = vld [vmem:[#allocation8 + $0x14] sm:$0xf]
    %v395 = vld [vmem:[#allocation8 + $0x18] sm:$0xf]
    %v396 = vld [vmem:[#allocation8 + $0x1c] sm:$0xf]
    %v397 = vld [vmem:[#allocation8 + $0x20] sm:$0xf]
    %v398 = vld [vmem:[#allocation8 + $0x24] sm:$0xf]
    %v399 = vld [vmem:[#allocation8 + $0x28] sm:$0xf]
    %v400 = vld [vmem:[#allocation8 + $0x2c] sm:$0xf]
    %v401 = vld [vmem:[#allocation8 + $0x30] sm:$0xf]
    %v402 = vld [vmem:[#allocation8 + $0x34] sm:$0xf]
    %v403 = vld [vmem:[#allocation8 + $0x38] sm:$0xf]
    %v404 = vld [vmem:[#allocation8 + $0x3c] sm:$0xf]
    %v405 = vlaneseq
    %v406 = vshrl.u32 %v405, 7
    %v407 = vsub.s32 6, %v406
    %v408 = vrot.slane %v94, %v407
    %v425 = vunpack.c.l.b16 %v389
    %v426 = vunpack.c.l.b16 %v390
    %v427 = vunpack.c.l.b16 %v391
    %v428 = vunpack.c.l.b16 %v392
    %v429 = vunpack.c.l.b16 %v393
    %v430 = vunpack.c.l.b16 %v394
    %v431 = vunpack.c.l.b16 %v395
    %v432 = vunpack.c.l.b16 %v396
    %v433 = vunpack.c.l.b16 %v397
    %v434 = vunpack.c.l.b16 %v398
    %v435 = vunpack.c.l.b16 %v399
    %v436 = vunpack.c.l.b16 %v400
    %v437 = vunpack.c.l.b16 %v401
    %v438 = vunpack.c.l.b16 %v402
    %v439 = vunpack.c.l.b16 %v403
    %v440 = vunpack.c.l.b16 %v404
    %v441 = vpack.c.b16 %v426, %v425
    %v442 = vpack.c.b16 %v428, %v427
    %v443 = vpack.c.b16 %v430, %v429
    %v444 = vpack.c.b16 %v432, %v431
    %v445 = vpack.c.b16 %v434, %v433
    %v446 = vpack.c.b16 %v436, %v435
    %v447 = vpack.c.b16 %v438, %v437
    %v448 = vpack.c.b16 %v440, %v439
    %457 = vmatprep.subr.bf16.mxu0 0
    %458 = vmatpush1.bf16.msra.mxu0 %v448
    %459 = vmatprep.subr.bf16.mxu0 0
    %460 = vmatpush1.bf16.msra.mxu0 %v447
    %461 = vmatprep.subr.bf16.mxu0 0
    %462 = vmatpush1.bf16.msra.mxu0 %v446
    %463 = vmatprep.subr.bf16.mxu0 0
    %464 = vmatpush1.bf16.msra.mxu0 %v445
    %465 = vmatprep.subr.bf16.mxu0 0
    %466 = vmatpush1.bf16.msra.mxu0 %v444
    %467 = vmatprep.subr.bf16.mxu0 0
    %468 = vmatpush1.bf16.msra.mxu0 %v443
    %469 = vmatprep.subr.bf16.mxu0 0
    %470 = vmatpush1.bf16.msra.mxu0 %v442
    %471 = vmatprep.subr.bf16.mxu0 0
    %472 = vmatpush1.bf16.msra.mxu0 %v441
    %473 = vmatprep.subr.bf16.mxu0 0
    %474 = vmatpush2.bf16.msra.mxu0 0
    %475 = vmatprep.subr.bf16.mxu0 0
    %476 = vmatpush2.bf16.msra.mxu0 0
    %477 = vmatprep.subr.bf16.mxu0 0
    %478 = vmatpush2.bf16.msra.mxu0 0
    %479 = vmatprep.subr.bf16.mxu0 0
    %480 = vmatpush2.bf16.msra.mxu0 0
    %481 = vmatprep.subr.bf16.mxu0 0
    %482 = vmatpush2.bf16.msra.mxu0 0
    %483 = vmatprep.subr.bf16.mxu0 0
    %484 = vmatpush2.bf16.msra.mxu0 0
    %485 = vmatprep.subr.bf16.mxu0 0
    %486 = vmatpush2.bf16.msra.mxu0 0
    %487 = vmatprep.subr.bf16.mxu0 0
    %488 = vmatpush2.bf16.msra.mxu0 0
    %489 = vmatprep.mubr.bf16.mxu0 0
    %490 = vmatmul.mubr.bf16.gmra.mxu0 %v226
    %v491 = vpop.f32.mrf.mxu0
    %v492 = vadd.f32 %v408, %v491
    %v493 = vpop.f32.mrf.mxu0
    %v494 = vpop.f32.mrf.mxu0
    %v495 = vadd.f32 %v408, %v494
    %v496 = vpop.f32.mrf.mxu0
    %497 = vmatprep.mubr.bf16.mxu0 0
    %498 = vmatmul.mubr.bf16.gmra.mxu0 %v227
    %v499 = vpop.f32.mrf.mxu0
    %v500 = vadd.f32 %v408, %v499
    %v501 = vpop.f32.mrf.mxu0
    %v502 = vpop.f32.mrf.mxu0
    %v503 = vadd.f32 %v408, %v502
    %v504 = vpop.f32.mrf.mxu0
    %505 = vdwg.mxu0
    %v506 = vpack.c.bf16 %v375, %v371
    %v507 = vpack.c.bf16 %v385, %v381
    %v508 = vpack.c.bf16 %v377, %v373
    %v509 = vpack.c.bf16 %v387, %v383
    %v510 = vpack.c.bf16 %v495, %v492
    %v511 = vpack.c.bf16 %v503, %v500
    %vm512 = vcmask 523264
    %v514 = vsel %vm512, %v506, 0
    %v517 = vsel %vm512, %v508, 0
    %519 = vmatprep.subr.bf16.mxu0 0
    %520 = vmatpush1.bf16.xpose.msra.mxu0 0
    %521 = vmatprep.subr.bf16.mxu0 0
    %522 = vmatpush1.bf16.xpose.msra.mxu0 0
    %523 = vmatprep.subr.bf16.mxu0 0
    %524 = vmatpush1.bf16.xpose.msra.mxu0 0
    %525 = vmatprep.subr.bf16.mxu0 0
    %526 = vmatpush1.bf16.xpose.msra.mxu0 0
    %527 = vmatprep.subr.bf16.mxu0 0
    %528 = vmatpush1.bf16.xpose.msra.mxu0 0
    %529 = vmatprep.subr.bf16.mxu0 0
    %530 = vmatpush1.bf16.xpose.msra.mxu0 0
    %531 = vmatprep.subr.bf16.mxu0 0
    %532 = vmatpush1.bf16.xpose.msra.mxu0 0
    %533 = vmatprep.subr.bf16.mxu0 0
    %534 = vmatpush1.bf16.xpose.msra.mxu0 %v517
    %535 = vmatprep.subr.bf16.mxu0 0
    %536 = vmatpush2.bf16.xpose.msra.mxu0 0
    %537 = vmatprep.subr.bf16.mxu0 0
    %538 = vmatpush2.bf16.xpose.msra.mxu0 0
    %539 = vmatprep.subr.bf16.mxu0 0
    %540 = vmatpush2.bf16.xpose.msra.mxu0 0
    %541 = vmatprep.subr.bf16.mxu0 0
    %542 = vmatpush2.bf16.xpose.msra.mxu0 0
    %543 = vmatprep.subr.bf16.mxu0 0
    %544 = vmatpush2.bf16.xpose.msra.mxu0 0
    %545 = vmatprep.subr.bf16.mxu0 0
    %546 = vmatpush2.bf16.xpose.msra.mxu0 0
    %547 = vmatprep.subr.bf16.mxu0 0
    %548 = vmatpush2.bf16.xpose.msra.mxu0 0
    %549 = vmatprep.subr.bf16.mxu0 0
    %550 = vmatpush2.bf16.xpose.msra.mxu0 0
    %551 = vmatprep.mubr.bf16.mxu0 0
    %552 = vmatmul.mubr.bf16.gmra.mxu0 %v514
    %v553 = vpop.f32.mrf.mxu0
    %v554 = vadd.f32 0.0, %v553
    %v555 = vpop.f32.mrf.mxu0
    %v556 = vpop.f32.mrf.mxu0
    %v557 = vadd.f32 0.0, %v556
    %v558 = vpop.f32.mrf.mxu0
    %559 = vdwg.mxu0
    %v561 = vsel %vm512, %v507, 0
    %v564 = vsel %vm512, %v509, 0
    %566 = vmatprep.subr.bf16.mxu0 0
    %567 = vmatpush1.bf16.xpose.msra.mxu0 0
    %568 = vmatprep.subr.bf16.mxu0 0
    %569 = vmatpush1.bf16.xpose.msra.mxu0 0
    %570 = vmatprep.subr.bf16.mxu0 0
    %571 = vmatpush1.bf16.xpose.msra.mxu0 0
    %572 = vmatprep.subr.bf16.mxu0 0
    %573 = vmatpush1.bf16.xpose.msra.mxu0 0
    %574 = vmatprep.subr.bf16.mxu0 0
    %575 = vmatpush1.bf16.xpose.msra.mxu0 0
    %576 = vmatprep.subr.bf16.mxu0 0
    %577 = vmatpush1.bf16.xpose.msra.mxu0 0
    %578 = vmatprep.subr.bf16.mxu0 0
    %579 = vmatpush1.bf16.xpose.msra.mxu0 0
    %580 = vmatprep.subr.bf16.mxu0 0
    %581 = vmatpush1.bf16.xpose.msra.mxu0 %v564
    %582 = vmatprep.subr.bf16.mxu0 0
    %583 = vmatpush2.bf16.xpose.msra.mxu0 0
    %584 = vmatprep.subr.bf16.mxu0 0
    %585 = vmatpush2.bf16.xpose.msra.mxu0 0
    %586 = vmatprep.subr.bf16.mxu0 0
    %587 = vmatpush2.bf16.xpose.msra.mxu0 0
    %588 = vmatprep.subr.bf16.mxu0 0
    %589 = vmatpush2.bf16.xpose.msra.mxu0 0
    %590 = vmatprep.subr.bf16.mxu0 0
    %591 = vmatpush2.bf16.xpose.msra.mxu0 0
    %592 = vmatprep.subr.bf16.mxu0 0
    %593 = vmatpush2.bf16.xpose.msra.mxu0 0
    %594 = vmatprep.subr.bf16.mxu0 0
    %595 = vmatpush2.bf16.xpose.msra.mxu0 0
    %596 = vmatprep.subr.bf16.mxu0 0
    %597 = vmatpush2.bf16.xpose.msra.mxu0 0
    %598 = vmatprep.mubr.bf16.mxu0 0
    %599 = vmatmul.mubr.bf16.gmra.mxu0 %v561
    %v600 = vpop.f32.mrf.mxu0
    %v601 = vadd.f32 0.0, %v600
    %v602 = vpop.f32.mrf.mxu0
    %v603 = vpop.f32.mrf.mxu0
    %v604 = vadd.f32 0.0, %v603
    %v605 = vpop.f32.mrf.mxu0
    %606 = vdwg.mxu0
    %vm607 = vcmask 130048
    %v608 = vsel %vm607, %v554, -inf
    %609 = vmax.xlane.f32.xlu0 %v608
    %v610 = vpop.xlane.xlu0 %609
    %v611 = vsel %vm607, %v557, -inf
    %612 = vmax.xlane.f32.xlu0 %v611
    %v613 = vpop.xlane.xlu0 %612
    %v614 = vsel %vm607, %v601, -inf
    %615 = vmax.xlane.f32.xlu0 %v614
    %v616 = vpop.xlane.xlu0 %615
    %v617 = vsel %vm607, %v604, -inf
    %618 = vmax.xlane.f32.xlu0 %v617
    %v619 = vpop.xlane.xlu0 %618
    %v620 = vsub.f32 %v554, %v610
    %v621 = vsub.f32 %v557, %v613
    %v622 = vsub.f32 %v601, %v616
    %v623 = vsub.f32 %v604, %v619
    %v624 = vmul.f32 %v620, 1.442695
    %v625 = vpow.pop %v624
    %v626 = vmul.f32 %v621, 1.442695
    %v627 = vpow.pop %v626
    %v628 = vmul.f32 %v622, 1.442695
    %v629 = vpow.pop %v628
    %v630 = vmul.f32 %v623, 1.442695
    %v631 = vpow.pop %v630
    %v632 = vsel %vm607, %v625, 0.0
    %633 = vadd.xlane.f32.xlu0 %v632
    %v634 = vpop.xlane.xlu0 %633
    %v635 = vsel %vm607, %v627, 0.0
    %636 = vadd.xlane.f32.xlu0 %v635
    %v637 = vpop.xlane.xlu0 %636
    %v638 = vsel %vm607, %v629, 0.0
    %639 = vadd.xlane.f32.xlu0 %v638
    %v640 = vpop.xlane.xlu0 %639
    %v641 = vsel %vm607, %v631, 0.0
    %642 = vadd.xlane.f32.xlu0 %v641
    %v643 = vpop.xlane.xlu0 %642
    %v644 = vrcp.pop %v634
    %v645 = vrcp.pop %v637
    %v646 = vrcp.pop %v640
    %v647 = vrcp.pop %v643
    %v648 = vmul.f32 %v625, %v644
    %v649 = vmul.f32 %v627, %v645
    %v650 = vmul.f32 %v629, %v646
    %v651 = vmul.f32 %v631, %v647
    %v652 = vpack.c.bf16 %v649, %v648
    %v653 = vpack.c.bf16 %v651, %v650
    %v655 = vsel %vm607, %v652, 0
    %657 = vmatprep.subr.bf16.mxu0 0
    %658 = vmatpush1.bf16.msra.mxu0 0
    %659 = vmatprep.subr.bf16.mxu0 0
    %660 = vmatpush1.bf16.msra.mxu0 0
    %661 = vmatprep.subr.bf16.mxu0 0
    %662 = vmatpush1.bf16.msra.mxu0 0
    %663 = vmatprep.subr.bf16.mxu0 0
    %664 = vmatpush1.bf16.msra.mxu0 0
    %665 = vmatprep.subr.bf16.mxu0 0
    %666 = vmatpush1.bf16.msra.mxu0 0
    %667 = vmatprep.subr.bf16.mxu0 0
    %668 = vmatpush1.bf16.msra.mxu0 0
    %669 = vmatprep.subr.bf16.mxu0 0
    %670 = vmatpush1.bf16.msra.mxu0 0
    %671 = vmatprep.subr.bf16.mxu0 0
    %672 = vmatpush1.bf16.msra.mxu0 %v510
    %673 = vmatprep.subr.bf16.mxu0 0
    %674 = vmatpush2.bf16.msra.mxu0 0
    %675 = vmatprep.subr.bf16.mxu0 0
    %676 = vmatpush2.bf16.msra.mxu0 0
    %677 = vmatprep.subr.bf16.mxu0 0
    %678 = vmatpush2.bf16.msra.mxu0 0
    %679 = vmatprep.subr.bf16.mxu0 0
    %680 = vmatpush2.bf16.msra.mxu0 0
    %681 = vmatprep.subr.bf16.mxu0 0
    %682 = vmatpush2.bf16.msra.mxu0 0
    %683 = vmatprep.subr.bf16.mxu0 0
    %684 = vmatpush2.bf16.msra.mxu0 0
    %685 = vmatprep.subr.bf16.mxu0 0
    %686 = vmatpush2.bf16.msra.mxu0 0
    %687 = vmatprep.subr.bf16.mxu0 0
    %688 = vmatpush2.bf16.msra.mxu0 0
    %689 = vmatprep.mubr.bf16.mxu0 0
    %690 = vmatmul.mubr.bf16.gmra.mxu0 %v655
    %v691 = vpop.f32.mrf.mxu0
    %v692 = vadd.f32 0.0, %v691
    %v693 = vpop.f32.mrf.mxu0
    %v694 = vpop.f32.mrf.mxu0
    %v695 = vadd.f32 0.0, %v694
    %v696 = vpop.f32.mrf.mxu0
    %697 = vdwg.mxu0
    %v699 = vsel %vm607, %v653, 0
    %701 = vmatprep.subr.bf16.mxu0 0
    %702 = vmatpush1.bf16.msra.mxu0 0
    %703 = vmatprep.subr.bf16.mxu0 0
    %704 = vmatpush1.bf16.msra.mxu0 0
    %705 = vmatprep.subr.bf16.mxu0 0
    %706 = vmatpush1.bf16.msra.mxu0 0
    %707 = vmatprep.subr.bf16.mxu0 0
    %708 = vmatpush1.bf16.msra.mxu0 0
    %709 = vmatprep.subr.bf16.mxu0 0
    %710 = vmatpush1.bf16.msra.mxu0 0
    %711 = vmatprep.subr.bf16.mxu0 0
    %712 = vmatpush1.bf16.msra.mxu0 0
    %713 = vmatprep.subr.bf16.mxu0 0
    %714 = vmatpush1.bf16.msra.mxu0 0
    %715 = vmatprep.subr.bf16.mxu0 0
    %716 = vmatpush1.bf16.msra.mxu0 %v511
    %717 = vmatprep.subr.bf16.mxu0 0
    %718 = vmatpush2.bf16.msra.mxu0 0
    %719 = vmatprep.subr.bf16.mxu0 0
    %720 = vmatpush2.bf16.msra.mxu0 0
    %721 = vmatprep.subr.bf16.mxu0 0
    %722 = vmatpush2.bf16.msra.mxu0 0
    %723 = vmatprep.subr.bf16.mxu0 0
    %724 = vmatpush2.bf16.msra.mxu0 0
    %725 = vmatprep.subr.bf16.mxu0 0
    %726 = vmatpush2.bf16.msra.mxu0 0
    %727 = vmatprep.subr.bf16.mxu0 0
    %728 = vmatpush2.bf16.msra.mxu0 0
    %729 = vmatprep.subr.bf16.mxu0 0
    %730 = vmatpush2.bf16.msra.mxu0 0
    %731 = vmatprep.subr.bf16.mxu0 0
    %732 = vmatpush2.bf16.msra.mxu0 0
    %733 = vmatprep.mubr.bf16.mxu0 0
    %734 = vmatmul.mubr.bf16.gmra.mxu0 %v699
    %v735 = vpop.f32.mrf.mxu0
    %v736 = vadd.f32 0.0, %v735
    %v737 = vpop.f32.mrf.mxu0
    %v738 = vpop.f32.mrf.mxu0
    %v739 = vadd.f32 0.0, %v738
    %v740 = vpop.f32.mrf.mxu0
    %741 = vdwg.mxu0
    %v742 = vpack.c.bf16 %v695, %v692
    %v743 = vpack.c.bf16 %v739, %v736
    %v744 = vld [vmem:[#allocation10] sm:$0xf]
    %v745 = vld [vmem:[#allocation10 + $0x4] sm:$0xf]
    %v746 = vld [vmem:[#allocation10 + $0x8] sm:$0xf]
    %v747 = vld [vmem:[#allocation10 + $0xc] sm:$0xf]
    %v748 = vld [vmem:[#allocation10 + $0x10] sm:$0xf]
    %v749 = vld [vmem:[#allocation10 + $0x14] sm:$0xf]
    %v750 = vld [vmem:[#allocation10 + $0x18] sm:$0xf]
    %v751 = vld [vmem:[#allocation10 + $0x1c] sm:$0xf]
    %753 = vrot.lane.b32.xlu0 %v506, 64
    %v754 = vpop.permute.xlu0 %753
    %756 = vrot.lane.b32.xlu0 %v508, 64
    %v757 = vpop.permute.xlu0 %756
    %v759 = vsel %vm512, %v754, 0
    %v762 = vsel %vm512, %v757, 0
    %764 = vmatprep.subr.bf16.mxu0 0
    %765 = vmatpush1.bf16.xpose.msra.mxu0 0
    %766 = vmatprep.subr.bf16.mxu0 0
    %767 = vmatpush1.bf16.xpose.msra.mxu0 0
    %768 = vmatprep.subr.bf16.mxu0 0
    %769 = vmatpush1.bf16.xpose.msra.mxu0 0
    %770 = vmatprep.subr.bf16.mxu0 0
    %771 = vmatpush1.bf16.xpose.msra.mxu0 0
    %772 = vmatprep.subr.bf16.mxu0 0
    %773 = vmatpush1.bf16.xpose.msra.mxu0 0
    %774 = vmatprep.subr.bf16.mxu0 0
    %775 = vmatpush1.bf16.xpose.msra.mxu0 0
    %776 = vmatprep.subr.bf16.mxu0 0
    %777 = vmatpush1.bf16.xpose.msra.mxu0 0
    %778 = vmatprep.subr.bf16.mxu0 0
    %779 = vmatpush1.bf16.xpose.msra.mxu0 %v762
    %780 = vmatprep.subr.bf16.mxu0 0
    %781 = vmatpush2.bf16.xpose.msra.mxu0 0
    %782 = vmatprep.subr.bf16.mxu0 0
    %783 = vmatpush2.bf16.xpose.msra.mxu0 0
    %784 = vmatprep.subr.bf16.mxu0 0
    %785 = vmatpush2.bf16.xpose.msra.mxu0 0
    %786 = vmatprep.subr.bf16.mxu0 0
    %787 = vmatpush2.bf16.xpose.msra.mxu0 0
    %788 = vmatprep.subr.bf16.mxu0 0
    %789 = vmatpush2.bf16.xpose.msra.mxu0 0
    %790 = vmatprep.subr.bf16.mxu0 0
    %791 = vmatpush2.bf16.xpose.msra.mxu0 0
    %792 = vmatprep.subr.bf16.mxu0 0
    %793 = vmatpush2.bf16.xpose.msra.mxu0 0
    %794 = vmatprep.subr.bf16.mxu0 0
    %795 = vmatpush2.bf16.xpose.msra.mxu0 0
    %796 = vmatprep.mubr.bf16.mxu0 0
    %797 = vmatmul.mubr.bf16.gmra.mxu0 %v759
    %v798 = vpop.f32.mrf.mxu0
    %v799 = vadd.f32 0.0, %v798
    %v800 = vpop.f32.mrf.mxu0
    %v801 = vpop.f32.mrf.mxu0
    %v802 = vadd.f32 0.0, %v801
    %v803 = vpop.f32.mrf.mxu0
    %804 = vdwg.mxu0
    %806 = vrot.lane.b32.xlu0 %v507, 64
    %v807 = vpop.permute.xlu0 %806
    %809 = vrot.lane.b32.xlu0 %v509, 64
    %v810 = vpop.permute.xlu0 %809
    %v812 = vsel %vm512, %v807, 0
    %v815 = vsel %vm512, %v810, 0
    %817 = vmatprep.subr.bf16.mxu0 0
    %818 = vmatpush1.bf16.xpose.msra.mxu0 0
    %819 = vmatprep.subr.bf16.mxu0 0
    %820 = vmatpush1.bf16.xpose.msra.mxu0 0
    %821 = vmatprep.subr.bf16.mxu0 0
    %822 = vmatpush1.bf16.xpose.msra.mxu0 0
    %823 = vmatprep.subr.bf16.mxu0 0
    %824 = vmatpush1.bf16.xpose.msra.mxu0 0
    %825 = vmatprep.subr.bf16.mxu0 0
    %826 = vmatpush1.bf16.xpose.msra.mxu0 0
    %827 = vmatprep.subr.bf16.mxu0 0
    %828 = vmatpush1.bf16.xpose.msra.mxu0 0
    %829 = vmatprep.subr.bf16.mxu0 0
    %830 = vmatpush1.bf16.xpose.msra.mxu0 0
    %831 = vmatprep.subr.bf16.mxu0 0
    %832 = vmatpush1.bf16.xpose.msra.mxu0 %v815
    %833 = vmatprep.subr.bf16.mxu0 0
    %834 = vmatpush2.bf16.xpose.msra.mxu0 0
    %835 = vmatprep.subr.bf16.mxu0 0
    %836 = vmatpush2.bf16.xpose.msra.mxu0 0
    %837 = vmatprep.subr.bf16.mxu0 0
    %838 = vmatpush2.bf16.xpose.msra.mxu0 0
    %839 = vmatprep.subr.bf16.mxu0 0
    %840 = vmatpush2.bf16.xpose.msra.mxu0 0
    %841 = vmatprep.subr.bf16.mxu0 0
    %842 = vmatpush2.bf16.xpose.msra.mxu0 0
    %843 = vmatprep.subr.bf16.mxu0 0
    %844 = vmatpush2.bf16.xpose.msra.mxu0 0
    %845 = vmatprep.subr.bf16.mxu0 0
    %846 = vmatpush2.bf16.xpose.msra.mxu0 0
    %847 = vmatprep.subr.bf16.mxu0 0
    %848 = vmatpush2.bf16.xpose.msra.mxu0 0
    %849 = vmatprep.mubr.bf16.mxu0 0
    %850 = vmatmul.mubr.bf16.gmra.mxu0 %v812
    %v851 = vpop.f32.mrf.mxu0
    %v852 = vadd.f32 0.0, %v851
    %v853 = vpop.f32.mrf.mxu0
    %v854 = vpop.f32.mrf.mxu0
    %v855 = vadd.f32 0.0, %v854
    %v856 = vpop.f32.mrf.mxu0
    %857 = vdwg.mxu0
    %v858 = vsel %vm607, %v799, -inf
    %859 = vmax.xlane.f32.xlu0 %v858
    %v860 = vpop.xlane.xlu0 %859
    %v861 = vsel %vm607, %v802, -inf
    %862 = vmax.xlane.f32.xlu0 %v861
    %v863 = vpop.xlane.xlu0 %862
    %v864 = vsel %vm607, %v852, -inf
    %865 = vmax.xlane.f32.xlu0 %v864
    %v866 = vpop.xlane.xlu0 %865
    %v867 = vsel %vm607, %v855, -inf
    %868 = vmax.xlane.f32.xlu0 %v867
    %v869 = vpop.xlane.xlu0 %868
    %v870 = vsub.f32 %v799, %v860
    %v871 = vsub.f32 %v802, %v863
    %v872 = vsub.f32 %v852, %v866
    %v873 = vsub.f32 %v855, %v869
    %v874 = vmul.f32 %v870, 1.442695
    %v875 = vpow.pop %v874
    %v876 = vmul.f32 %v871, 1.442695
    %v877 = vpow.pop %v876
    %v878 = vmul.f32 %v872, 1.442695
    %v879 = vpow.pop %v878
    %v880 = vmul.f32 %v873, 1.442695
    %v881 = vpow.pop %v880
    %v882 = vsel %vm607, %v875, 0.0
    %883 = vadd.xlane.f32.xlu0 %v882
    %v884 = vpop.xlane.xlu0 %883
    %v885 = vsel %vm607, %v877, 0.0
    %886 = vadd.xlane.f32.xlu0 %v885
    %v887 = vpop.xlane.xlu0 %886
    %v888 = vsel %vm607, %v879, 0.0
    %889 = vadd.xlane.f32.xlu0 %v888
    %v890 = vpop.xlane.xlu0 %889
    %v891 = vsel %vm607, %v881, 0.0
    %892 = vadd.xlane.f32.xlu0 %v891
    %v893 = vpop.xlane.xlu0 %892
    %v894 = vrcp.pop %v884
    %v895 = vrcp.pop %v887
    %v896 = vrcp.pop %v890
    %v897 = vrcp.pop %v893
    %v898 = vmul.f32 %v875, %v894
    %v899 = vmul.f32 %v877, %v895
    %v900 = vmul.f32 %v879, %v896
    %v901 = vmul.f32 %v881, %v897
    %v902 = vpack.c.bf16 %v899, %v898
    %v903 = vpack.c.bf16 %v901, %v900
    %905 = vrot.lane.b32.xlu0 %v510, 64
    %v906 = vpop.permute.xlu0 %905
    %v909 = vsel %vm607, %v902, 0
    %911 = vmatprep.subr.bf16.mxu0 0
    %912 = vmatpush1.bf16.msra.mxu0 0
    %913 = vmatprep.subr.bf16.mxu0 0
    %914 = vmatpush1.bf16.msra.mxu0 0
    %915 = vmatprep.subr.bf16.mxu0 0
    %916 = vmatpush1.bf16.msra.mxu0 0
    %917 = vmatprep.subr.bf16.mxu0 0
    %918 = vmatpush1.bf16.msra.mxu0 0
    %919 = vmatprep.subr.bf16.mxu0 0
    %920 = vmatpush1.bf16.msra.mxu0 0
    %921 = vmatprep.subr.bf16.mxu0 0
    %922 = vmatpush1.bf16.msra.mxu0 0
    %923 = vmatprep.subr.bf16.mxu0 0
    %924 = vmatpush1.bf16.msra.mxu0 0
    %925 = vmatprep.subr.bf16.mxu0 0
    %926 = vmatpush1.bf16.msra.mxu0 %v906
    %927 = vmatprep.subr.bf16.mxu0 0
    %928 = vmatpush2.bf16.msra.mxu0 0
    %929 = vmatprep.subr.bf16.mxu0 0
    %930 = vmatpush2.bf16.msra.mxu0 0
    %931 = vmatprep.subr.bf16.mxu0 0
    %932 = vmatpush2.bf16.msra.mxu0 0
    %933 = vmatprep.subr.bf16.mxu0 0
    %934 = vmatpush2.bf16.msra.mxu0 0
    %935 = vmatprep.subr.bf16.mxu0 0
    %936 = vmatpush2.bf16.msra.mxu0 0
    %937 = vmatprep.subr.bf16.mxu0 0
    %938 = vmatpush2.bf16.msra.mxu0 0
    %939 = vmatprep.subr.bf16.mxu0 0
    %940 = vmatpush2.bf16.msra.mxu0 0
    %941 = vmatprep.subr.bf16.mxu0 0
    %942 = vmatpush2.bf16.msra.mxu0 0
    %943 = vmatprep.mubr.bf16.mxu0 0
    %944 = vmatmul.mubr.bf16.gmra.mxu0 %v909
    %v945 = vpop.f32.mrf.mxu0
    %v946 = vadd.f32 0.0, %v945
    %v947 = vpop.f32.mrf.mxu0
    %v948 = vpop.f32.mrf.mxu0
    %v949 = vadd.f32 0.0, %v948
    %v950 = vpop.f32.mrf.mxu0
    %951 = vdwg.mxu0
    %953 = vrot.lane.b32.xlu0 %v511, 64
    %v954 = vpop.permute.xlu0 %953
    %v957 = vsel %vm607, %v903, 0
    %959 = vmatprep.subr.bf16.mxu0 0
    %960 = vmatpush1.bf16.msra.mxu0 0
    %961 = vmatprep.subr.bf16.mxu0 0
    %962 = vmatpush1.bf16.msra.mxu0 0
    %963 = vmatprep.subr.bf16.mxu0 0
    %964 = vmatpush1.bf16.msra.mxu0 0
    %965 = vmatprep.subr.bf16.mxu0 0
    %966 = vmatpush1.bf16.msra.mxu0 0
    %967 = vmatprep.subr.bf16.mxu0 0
    %968 = vmatpush1.bf16.msra.mxu0 0
    %969 = vmatprep.subr.bf16.mxu0 0
    %970 = vmatpush1.bf16.msra.mxu0 0
    %971 = vmatprep.subr.bf16.mxu0 0
    %972 = vmatpush1.bf16.msra.mxu0 0
    %973 = vmatprep.subr.bf16.mxu0 0
    %974 = vmatpush1.bf16.msra.mxu0 %v954
    %975 = vmatprep.subr.bf16.mxu0 0
    %976 = vmatpush2.bf16.msra.mxu0 0
    %977 = vmatprep.subr.bf16.mxu0 0
    %978 = vmatpush2.bf16.msra.mxu0 0
    %979 = vmatprep.subr.bf16.mxu0 0
    %980 = vmatpush2.bf16.msra.mxu0 0
    %981 = vmatprep.subr.bf16.mxu0 0
    %982 = vmatpush2.bf16.msra.mxu0 0
    %983 = vmatprep.subr.bf16.mxu0 0
    %984 = vmatpush2.bf16.msra.mxu0 0
    %985 = vmatprep.subr.bf16.mxu0 0
    %986 = vmatpush2.bf16.msra.mxu0 0
    %987 = vmatprep.subr.bf16.mxu0 0
    %988 = vmatpush2.bf16.msra.mxu0 0
    %989 = vmatprep.subr.bf16.mxu0 0
    %990 = vmatpush2.bf16.msra.mxu0 0
    %991 = vmatprep.mubr.bf16.mxu0 0
    %992 = vmatmul.mubr.bf16.gmra.mxu0 %v957
    %v993 = vpop.f32.mrf.mxu0
    %v994 = vadd.f32 0.0, %v993
    %v995 = vpop.f32.mrf.mxu0
    %v996 = vpop.f32.mrf.mxu0
    %v997 = vadd.f32 0.0, %v996
    %v998 = vpop.f32.mrf.mxu0
    %999 = vdwg.mxu0
    %v1000 = vpack.c.bf16 %v949, %v946
    %v1001 = vpack.c.bf16 %v997, %v994
    %v1002 = vld [vmem:[#allocation10 + $0x20] sm:$0xf]
    %v1003 = vld [vmem:[#allocation10 + $0x24] sm:$0xf]
    %v1004 = vld [vmem:[#allocation10 + $0x28] sm:$0xf]
    %v1005 = vld [vmem:[#allocation10 + $0x2c] sm:$0xf]
    %v1006 = vld [vmem:[#allocation10 + $0x30] sm:$0xf]
    %v1007 = vld [vmem:[#allocation10 + $0x34] sm:$0xf]
    %v1008 = vld [vmem:[#allocation10 + $0x38] sm:$0xf]
    %v1009 = vld [vmem:[#allocation10 + $0x3c] sm:$0xf]
    %v1018 = vunpack.c.l.b16 %v1002
    %v1019 = vunpack.c.l.b16 %v1003
    %v1020 = vunpack.c.l.b16 %v1004
    %v1021 = vunpack.c.l.b16 %v1005
    %v1022 = vunpack.c.l.b16 %v1006
    %v1023 = vunpack.c.l.b16 %v1007
    %v1024 = vunpack.c.l.b16 %v1008
    %v1025 = vunpack.c.l.b16 %v1009
    %v1026 = vpack.c.b16 %v1019, %v1018
    %v1027 = vpack.c.b16 %v1021, %v1020
    %v1028 = vpack.c.b16 %v1023, %v1022
    %v1029 = vpack.c.b16 %v1025, %v1024
    %v1035 = vsel %vm512, %v1000, 0
    %v1038 = vsel %vm512, %v1001, 0
    %1040 = vmatprep.subr.bf16.mxu0 0
    %1041 = vmatpush1.bf16.msra.mxu0 0
    %1042 = vmatprep.subr.bf16.mxu0 0
    %1043 = vmatpush1.bf16.msra.mxu0 0
    %1044 = vmatprep.subr.bf16.mxu0 0
    %1045 = vmatpush1.bf16.msra.mxu0 0
    %1046 = vmatprep.subr.bf16.mxu0 0
    %1047 = vmatpush1.bf16.msra.mxu0 0
    %1048 = vmatprep.subr.bf16.mxu0 0
    %1049 = vmatpush1.bf16.msra.mxu0 %v1029
    %1050 = vmatprep.subr.bf16.mxu0 0
    %1051 = vmatpush1.bf16.msra.mxu0 %v1028
    %1052 = vmatprep.subr.bf16.mxu0 0
    %1053 = vmatpush1.bf16.msra.mxu0 %v1027
    %1054 = vmatprep.subr.bf16.mxu0 0
    %1055 = vmatpush1.bf16.msra.mxu0 %v1026
    %1056 = vmatprep.subr.bf16.mxu0 0
    %1057 = vmatpush2.bf16.msra.mxu0 0
    %1058 = vmatprep.subr.bf16.mxu0 0
    %1059 = vmatpush2.bf16.msra.mxu0 0
    %1060 = vmatprep.subr.bf16.mxu0 0
    %1061 = vmatpush2.bf16.msra.mxu0 0
    %1062 = vmatprep.subr.bf16.mxu0 0
    %1063 = vmatpush2.bf16.msra.mxu0 0
    %1064 = vmatprep.subr.bf16.mxu0 0
    %1065 = vmatpush2.bf16.msra.mxu0 0
    %1066 = vmatprep.subr.bf16.mxu0 0
    %1067 = vmatpush2.bf16.msra.mxu0 0
    %1068 = vmatprep.subr.bf16.mxu0 0
    %1069 = vmatpush2.bf16.msra.mxu0 0
    %1070 = vmatprep.subr.bf16.mxu0 0
    %1071 = vmatpush2.bf16.msra.mxu0 0
    %1072 = vmatprep.mubr.bf16.mxu0 0
    %1073 = vmatmul.mubr.bf16.gmra.mxu0 %v1035
    %v1074 = vpop.f32.mrf.mxu0
    %v1075 = vadd.f32 0.0, %v1074
    %v1076 = vpop.f32.mrf.mxu0
    %v1077 = vpop.f32.mrf.mxu0
    %v1078 = vadd.f32 0.0, %v1077
    %v1079 = vpop.f32.mrf.mxu0
    %1080 = vmatprep.mubr.bf16.mxu0 0
    %1081 = vmatmul.mubr.bf16.gmra.mxu0 %v1038
    %v1082 = vpop.f32.mrf.mxu0
    %v1083 = vadd.f32 0.0, %v1082
    %v1084 = vpop.f32.mrf.mxu0
    %v1085 = vpop.f32.mrf.mxu0
    %v1086 = vadd.f32 0.0, %v1085
    %v1087 = vpop.f32.mrf.mxu0
    %1088 = vdwg.mxu0
    %v1097 = vunpack.c.l.b16 %v744
    %v1098 = vunpack.c.l.b16 %v745
    %v1099 = vunpack.c.l.b16 %v746
    %v1100 = vunpack.c.l.b16 %v747
    %v1101 = vunpack.c.l.b16 %v748
    %v1102 = vunpack.c.l.b16 %v749
    %v1103 = vunpack.c.l.b16 %v750
    %v1104 = vunpack.c.l.b16 %v751
    %v1105 = vpack.c.b16 %v1098, %v1097
    %v1106 = vpack.c.b16 %v1100, %v1099
    %v1107 = vpack.c.b16 %v1102, %v1101
    %v1108 = vpack.c.b16 %v1104, %v1103
    %v1114 = vsel %vm512, %v742, 0
    %v1117 = vsel %vm512, %v743, 0
    %1119 = vmatprep.subr.bf16.mxu0 0
    %1120 = vmatpush1.bf16.msra.mxu0 0
    %1121 = vmatprep.subr.bf16.mxu0 0
    %1122 = vmatpush1.bf16.msra.mxu0 0
    %1123 = vmatprep.subr.bf16.mxu0 0
    %1124 = vmatpush1.bf16.msra.mxu0 0
    %1125 = vmatprep.subr.bf16.mxu0 0
    %1126 = vmatpush1.bf16.msra.mxu0 0
    %1127 = vmatprep.subr.bf16.mxu0 0
    %1128 = vmatpush1.bf16.msra.mxu0 %v1108
    %1129 = vmatprep.subr.bf16.mxu0 0
    %1130 = vmatpush1.bf16.msra.mxu0 %v1107
    %1131 = vmatprep.subr.bf16.mxu0 0
    %1132 = vmatpush1.bf16.msra.mxu0 %v1106
    %1133 = vmatprep.subr.bf16.mxu0 0
    %1134 = vmatpush1.bf16.msra.mxu0 %v1105
    %1135 = vmatprep.subr.bf16.mxu0 0
    %1136 = vmatpush2.bf16.msra.mxu0 0
    %1137 = vmatprep.subr.bf16.mxu0 0
    %1138 = vmatpush2.bf16.msra.mxu0 0
    %1139 = vmatprep.subr.bf16.mxu0 0
    %1140 = vmatpush2.bf16.msra.mxu0 0
    %1141 = vmatprep.subr.bf16.mxu0 0
    %1142 = vmatpush2.bf16.msra.mxu0 0
    %1143 = vmatprep.subr.bf16.mxu0 0
    %1144 = vmatpush2.bf16.msra.mxu0 0
    %1145 = vmatprep.subr.bf16.mxu0 0
    %1146 = vmatpush2.bf16.msra.mxu0 0
    %1147 = vmatprep.subr.bf16.mxu0 0
    %1148 = vmatpush2.bf16.msra.mxu0 0
    %1149 = vmatprep.subr.bf16.mxu0 0
    %1150 = vmatpush2.bf16.msra.mxu0 0
    %1151 = vmatprep.mubr.bf16.mxu0 0
    %1152 = vmatmul.mubr.bf16.gmra.mxu0 %v1114
    %v1153 = vpop.f32.mrf.mxu0
    %v1154 = vadd.f32 %v1075, %v1153
    %v1155 = vpop.f32.mrf.mxu0
    %v1156 = vpop.f32.mrf.mxu0
    %v1157 = vadd.f32 %v1078, %v1156
    %v1158 = vpop.f32.mrf.mxu0
    %1159 = vmatprep.mubr.bf16.mxu0 0
    %1160 = vmatmul.mubr.bf16.gmra.mxu0 %v1117
    %v1161 = vpop.f32.mrf.mxu0
    %v1162 = vadd.f32 %v1083, %v1161
    %v1163 = vpop.f32.mrf.mxu0
    %v1164 = vpop.f32.mrf.mxu0
    %v1165 = vadd.f32 %v1086, %v1164
    %v1166 = vpop.f32.mrf.mxu0
    %1167 = vdwg.mxu0
    %v1168 = vlaneseq
    %v1169 = vshrl.u32 %v1168, 7
    %v1170 = vsub.s32 7, %v1169
    %v1171 = vrot.slane %v94, %v1170
    %v1172 = vadd.f32 %v1154, %v1171
    %v1173 = vadd.f32 %v1157, %v1171
    %v1174 = vadd.f32 %v1162, %v1171
    %v1175 = vadd.f32 %v1165, %v1171
    %1176 = vadd.xlane.f32.xlu0 %v1172
    %v1177 = vpop.xlane.xlu0 %1176
    %1178 = vadd.xlane.f32.xlu0 %v1173
    %v1179 = vpop.xlane.xlu0 %1178
    %1180 = vadd.xlane.f32.xlu0 %v1174
    %v1181 = vpop.xlane.xlu0 %1180
    %1182 = vadd.xlane.f32.xlu0 %v1175
    %v1183 = vpop.xlane.xlu0 %1182
    %v1184 = vmul.f32 %v1177, %v107
    %v1185 = vmul.f32 %v1179, %v107
    %v1186 = vmul.f32 %v1181, %v107
    %v1187 = vmul.f32 %v1183, %v107
    %v1188 = vsub.f32 %v1172, %v1184
    %v1189 = vsub.f32 %v1173, %v1185
    %v1190 = vsub.f32 %v1174, %v1186
    %v1191 = vsub.f32 %v1175, %v1187
    %v1192 = vmul.f32 %v1188, %v1188
    %v1193 = vmul.f32 %v1189, %v1189
    %v1194 = vmul.f32 %v1190, %v1190
    %v1195 = vmul.f32 %v1191, %v1191
    %1196 = vadd.xlane.f32.xlu0 %v1192
    %v1197 = vpop.xlane.xlu0 %1196
    %1198 = vadd.xlane.f32.xlu0 %v1193
    %v1199 = vpop.xlane.xlu0 %1198
    %1200 = vadd.xlane.f32.xlu0 %v1194
    %v1201 = vpop.xlane.xlu0 %1200
    %1202 = vadd.xlane.f32.xlu0 %v1195
    %v1203 = vpop.xlane.xlu0 %1202
    %v1204 = vmul.f32 %v1197, %v107
    %v1205 = vmul.f32 %v1199, %v107
    %v1206 = vmul.f32 %v1201, %v107
    %v1207 = vmul.f32 %v1203, %v107
    %v1208 = vadd.f32 %v1204, 1e-05
    %v1209 = vadd.f32 %v1205, 1e-05
    %v1210 = vadd.f32 %v1206, 1e-05
    %v1211 = vadd.f32 %v1207, 1e-05
    %v1212 = vrsqrt.pop %v1208
    %v1213 = vrsqrt.pop %v1209
    %v1214 = vrsqrt.pop %v1210
    %v1215 = vrsqrt.pop %v1211
    %v1216 = vmul.f32 %v1188, %v1212
    %v1217 = vmul.f32 %v1189, %v1213
    %v1218 = vmul.f32 %v1190, %v1214
    %v1219 = vmul.f32 %v1191, %v1215
    %v1220 = vlaneseq
    %v1221 = vshrl.u32 %v1220, 7
    %v1222 = vsub.s32 4, %v1221
    %v1223 = vrot.slane %v94, %v1222
    %v1224 = vmul.f32 %v1216, %v1223
    %v1225 = vmul.f32 %v1217, %v1223
    %v1226 = vmul.f32 %v1218, %v1223
    %v1227 = vmul.f32 %v1219, %v1223
    %v1228 = vlaneseq
    %v1229 = vshrl.u32 %v1228, 7
    %v1230 = vsub.s32 5, %v1229
    %v1231 = vrot.slane %v94, %v1230
    %v1232 = vadd.f32 %v1224, %v1231
    %v1233 = vadd.f32 %v1225, %v1231
    %v1234 = vadd.f32 %v1226, %v1231
    %v1235 = vadd.f32 %v1227, %v1231
    %v1236 = vmul.f32 %v1232, %v1232
    %v1237 = vmul.f32 %v1233, %v1233
    %v1238 = vmul.f32 %v1234, %v1234
    %v1239 = vmul.f32 %v1235, %v1235
    %v1240 = vadd.f32 %v1236, %v1237
    %v1241 = vrot.slane %v1240, 4
    %v1242 = vadd.f32 %v1240, %v1241
    %v1243 = vrot.slane %v1242, 2
    %v1244 = vadd.f32 %v1242, %v1243
    %v1245 = vrot.slane %v1244, 1
    %v1246 = vadd.f32 %v1244, %v1245
    %v1247 = vadd.f32 %v1238, %v1239
    %v1248 = vrot.slane %v1247, 4
    %v1249 = vadd.f32 %v1247, %v1248
    %v1250 = vrot.slane %v1249, 2
    %v1251 = vadd.f32 %v1249, %v1250
    %v1252 = vrot.slane %v1251, 1
    %v1253 = vadd.f32 %v1251, %v1252
    %v1254 = vrsqrt.pop %v1246
    %v1255 = vmul.f32 %v1246, %v1254
    %vm1256 = vcmp.eq.f32.partialorder %v1246, inf
    %v1257 = vsel %vm1256, %v1246, %v1255
    %vm1258 = vcmp.eq.f32.partialorder %v1246, 0.0
    %v1259 = vand.u32 %v1246, 2147483648
    %v1260 = vsel %vm1258, %v1259, %v1257
    %v1261 = vrsqrt.pop %v1253
    %v1262 = vmul.f32 %v1253, %v1261
    %vm1263 = vcmp.eq.f32.partialorder %v1253, inf
    %v1264 = vsel %vm1263, %v1253, %v1262
    %vm1265 = vcmp.eq.f32.partialorder %v1253, 0.0
    %v1266 = vand.u32 %v1253, 2147483648
    %v1267 = vsel %vm1265, %v1266, %v1264
    %v1268 = vmax.f32 %v1260, 1e-12
    %v1269 = vmax.f32 %v1267, 1e-12
    %v1270 = vrcp.pop %v1268
    %v1271 = vmul.f32 %v1232, %v1270
    %v1272 = vmul.f32 %v1233, %v1270
    %v1273 = vrcp.pop %v1269
    %v1274 = vmul.f32 %v1234, %v1273
    %v1275 = vmul.f32 %v1235, %v1273
    %1276 = vst [vmem:[#allocation11] sm:$0xff] %v1271
    %1277 = vst [vmem:[#allocation11 + $0x8] sm:$0xff] %v1272
    %1278 = vst [vmem:[#allocation11 + $0x10] sm:$0xff] %v1274
    %1279 = vst [vmem:[#allocation11 + $0x18] sm:$0xff] %v1275
    // Predicated region
    $region50: #{risk_model_forward.1} parent=1 // pred_check
      _
    $region51: #{risk_model_forward.1} parent=1 // pred_check_branch
      %1281 = sbr.rel (0) target = $region53
    $region52: #{risk_model_forward.1} parent=1 // pred_region
      %s1283 = ssub.s32 512, 512
      %1284 = vsyncadd [#allocation4], %s1283
      %s1285 = sshll.u32 [#allocation11], 4
      %s1286 = int_to_ptr.vmem [resolvable:$true] %s1285
      %1291 = dma.vmem_to_hbm [thread:$0]  %s1286, 512, %s7, [#allocation4], 128, 128, 8
    $region53: #{risk_model_forward.1} parent=1 // pred_fallthru
      _
    // Predicated region
    $region54: #{risk_model_forward.1} parent=1 // pred_check
      _
    $region55: #{risk_model_forward.1} parent=1 // pred_check_branch
      %1293 = sbr.rel (0) target = $region57
    $region56: #{risk_model_forward.1} parent=1 // pred_region
      %1294 = dma.done [#allocation4], 512
    $region57: #{risk_model_forward.1} parent=1 // pred_fallthru
      _
    %1295 = vsyncpa [#allocation3], 1
    %1296 = vsyncpa [#allocation6], 1
    %1297 = vsyncpa [#allocation9], 1
    %1298 = vsyncpa [#allocation4], 1

</llo_original>
